<compile_context>
chip_gen: v7x
topology: tpu7x:2x2x1
jax: 0.10.0
libtpu: 0.0.40
codegen_flags: <defaults>
</compile_context>

<pallas_src>
import functools

import numpy as np
import jax
import jax.numpy as jnp
from jax.experimental import pallas as pl
from jax.experimental.pallas import tpu as pltpu


def _resize_kernel(x_ref, m_ref, o_ref, *, concat_rep):
    # x_ref: (tm, w)         tm flattened patch rows (d*d patches fused into M)
    # m_ref: (w, mat_cols)   0/1 column-replication matrix (VMEM resident)
    # o_ref: (tm, out_width) lane-dense output rows
    y = jnp.dot(
        x_ref[...],
        m_ref[...],
        precision=jax.lax.Precision.HIGHEST,
        preferred_element_type=jnp.float32,
    ).astype(o_ref.dtype)
    if concat_rep > 1:
        # Row replication: output rows (i*d + k), k=0..d-1, all equal the
        # col-expanded source row i.  With W % 128 == 0 each piece is a whole
        # number of vregs, so this concat is pure vreg placement (no shifts).
        y = jnp.concatenate([y] * concat_rep, axis=-1)
    o_ref[...] = y


@functools.lru_cache(maxsize=None)
def _col_replication_matrix(d, W, fold_rep):
    """NumPy float32 0/1 matrix (w, fold_rep*W).

    Column k*W + C has a single 1 at row src_c[C] (nearest source column),
    so `patch_rows @ M` nearest-resizes the patch columns to width W and,
    when fold_rep > 1, also replicates the result fold_rep times along lanes
    (the row-replication of the upsample, laid out as (h, d, W) -> (H, W)).
    """
    w = W // d
    src_c = (np.arange(W) * w) // W
    m = np.zeros((w, W), np.float32)
    m[src_c, np.arange(W)] = 1.0
    if fold_rep > 1:
        m = np.tile(m, (1, fold_rep))
    return m


def _maybe_vmem_limit(bytes_needed):
    """Raise the scoped VMEM limit only when needed, capped per generation."""
    default_scoped = 16 * 1024 * 1024          # most restrictive default (v5e)
    if bytes_needed <= default_scoped:
        return None
    try:
        cap = int(getattr(pltpu.get_tpu_info(), "vmem_capacity_bytes",
                          64 * 1024 * 1024))
    except Exception:                          # pragma: no cover
        cap = 64 * 1024 * 1024                 # most restrictive capacity (v7x)
    return int(max(default_scoped, min(bytes_needed * 3 // 2,
                                       cap - 8 * 1024 * 1024)))


@functools.partial(jax.jit, static_argnames=("d",))
def _resize_all_patches(x, d):
    """Returns (d*d, N, C, H, W): every patch of x nearest-resized to (H, W)."""
    N, C, H, W = x.shape
    h, w = H // d, W // d
    P, NC = d * d, N * C

    # Pre-gather the d*d patches with a plain XLA reshape/transpose (reads x
    # once); matches the reference truncation to the first d*h rows / d*w cols.
    xt = (x[:, :, : d * h, : d * w]
          .reshape(N, C, d, h, d, w)
          .transpose(2, 4, 0, 1, 3, 5))                      # (d, d, N, C, h, w)

    if H % d == 0:
        rows, row_rep = h, d            # row upsample == replicate each row d times
    else:
        # Rare non-divisible-H case: replicate rows in the wrapper gather so the
        # kernel stays a single fused matmul (costs one extra ~d*x HBM read).
        src_r = (np.arange(H) * h) // H
        xt = xt[:, :, :, :, src_r, :]                        # (d, d, N, C, H, w)
        rows, row_rep = H, 1

    M = P * NC * rows
    x2 = xt.reshape(M, w)

    # Row replication strategy: lane-aligned concat when W is a lane multiple,
    # otherwise fold the replication into the (tiny) matrix columns.
    use_concat = row_rep > 1 and W % 128 == 0
    concat_rep = row_rep if use_concat else 1
    fold_rep = 1 if use_concat else row_rep
    out_width = row_rep * W
    mat_cols = fold_rep * W

    mat = jnp.asarray(_col_replication_matrix(d, W, fold_rep), dtype=x.dtype)

    itm = np.dtype(x.dtype).itemsize
    # M tile: keep the (double-buffered) output block around ~4 MiB so the
    # pipeline fits every generation's default scoped VMEM with headroom.
    tm = max(8, min(512, ((4 * 1024 * 1024) // max(1, out_width * itm)) // 8 * 8))
    if tm >= M:
        tm = M
    grid = (pl.cdiv(M, tm),)

    vmem_need = 2 * (tm * w + tm * out_width + w * mat_cols) * itm
    cost = pl.CostEstimate(
        flops=2 * M * w * mat_cols,
        transcendentals=0,
        bytes_accessed=(M * w + w * mat_cols + M * out_width) * itm,
    )

    out2 = pl.pallas_call(
        functools.partial(_resize_kernel, concat_rep=concat_rep),
        out_shape=jax.ShapeDtypeStruct((M, out_width), x.dtype),
        grid_spec=pltpu.PrefetchScalarGridSpec(
            num_scalar_prefetch=0,
            grid=grid,
            in_specs=[
                pl.BlockSpec((tm, w), lambda i: (i, 0)),        # patch-row tile
                pl.BlockSpec((w, mat_cols), lambda i: (0, 0)),  # shared matrix
            ],
            out_specs=pl.BlockSpec((tm, out_width), lambda i: (i, 0)),
        ),
        compiler_params=pltpu.CompilerParams(
            dimension_semantics=("parallel",),
            vmem_limit_bytes=_maybe_vmem_limit(vmem_need),
        ),
        cost_estimate=cost,
    )(x2, mat)

    # (M, out_width) is row-major identical to (P, N, C, h, d, W) (fast path)
    # or (P, N, C, H, W) (general path) -> free reshape.
    return out2.reshape(P, N, C, H, W)


def multi_scales(x, divisions):
    """JAX/Pallas equivalent of MultiScales.forward (no learnable params).

    Output list: [x] and, for every division d, [x] (prepended by
    _create_images) followed by the d*d patches of x, each nearest-resized
    back to the original spatial size.
    """
    out = [x]
    for d in divisions:
        patches = _resize_all_patches(x, d=int(d))   # (d*d, N, C, H, W)
        out.append(x)
        # Matching the module's list-of-images API materializes d*d separate
        # HBM copies; hot-path consumers should use the stacked `patches`.
        out.extend(list(patches))
    return out


def _reference(x, divisions):
    """Pure NumPy reference of the intended semantics."""
    x = np.asarray(x)
    N, C, H, W = x.shape
    out = [x]
    for d in divisions:
        h, w = H // d, W // d
        out.append(x)
        ri = (np.arange(H) * h) // H
        ci = (np.arange(W) * w) // W
        for pi in range(d):
            for pj in range(d):
                patch = x[:, :, pi * h:(pi + 1) * h, pj * w:(pj + 1) * w]
                up = patch[:, :, ri][:, :, :, ci]
                out.append(up)
    return out


if __name__ == "__main__":
    # Main check: divisible (d=2, 4) and non-divisible (d=3) divisions.
    x = jax.random.normal(jax.random.PRNGKey(0), (2, 4, 16, 16), dtype=jnp.float32)
    divisions = (2, 3, 4)
    outs = jax.block_until_ready(multi_scales(x, divisions))
    refs = _reference(np.asarray(x), divisions)
    assert len(outs) == len(refs), (len(outs), len(refs))
    for o, r in zip(outs, refs):
        assert o.shape == r.shape and o.dtype == x.dtype
        np.testing.assert_allclose(np.asarray(o), r, rtol=1e-5, atol=1e-6)

    # Also exercise the lane-aligned concat fast path (W multiple of 128).
    x2 = jax.random.normal(jax.random.PRNGKey(1), (1, 2, 8, 128), dtype=jnp.float32)
    outs2 = jax.block_until_ready(multi_scales(x2, (2,)))
    refs2 = _reference(np.asarray(x2), (2,))
    assert len(outs2) == len(refs2)
    for o, r in zip(outs2, refs2):
        assert o.shape == r.shape and o.dtype == x2.dtype
        np.testing.assert_allclose(np.asarray(o), r, rtol=1e-5, atol=1e-6)

    print("KERNEL_OK")
</pallas_src>

<mosaic_0001>
module attributes {stable_mosaic.version = 11 : i64} {
  func.func @_resize_kernel(%arg0: i32, %arg1: memref<256x8xf32, #tpu.memory_space<vmem>>, %arg2: memref<8x32xf32, #tpu.memory_space<vmem>>, %arg3: memref<256x32xf32, #tpu.memory_space<vmem>>) attributes {dimension_semantics = [#tpu.dimension_semantics<parallel>], iteration_bounds = array<i64: 1>, scalar_prefetch = 0 : i64, scratch_operands = 0 : i64, tpu.core_type = #tpu.core_type<tc>, window_params = [{transform_indices = @transform_0, window_bounds = array<i64: 256, 8>}, {pipeline_mode = #tpu.pipeline_mode<synchronous>, transform_indices = @transform_1, window_bounds = array<i64: 8, 32>}, {transform_indices = @transform_2, window_bounds = array<i64: 256, 32>}]} {
    %c0 = arith.constant 0 : index
    %c0_0 = arith.constant 0 : index
    %0 = vector.load %arg1[%c0, %c0_0] : memref<256x8xf32, #tpu.memory_space<vmem>>, vector<256x8xf32>
    %c0_1 = arith.constant 0 : index
    %c0_2 = arith.constant 0 : index
    %1 = vector.load %arg2[%c0_1, %c0_2] : memref<8x32xf32, #tpu.memory_space<vmem>>, vector<8x32xf32>
    %cst = arith.constant dense<0.000000e+00> : vector<256x32xf32>
    %2 = tpu.matmul %0, %1, %cst {dimension_numbers = #tpu.dot_dimension_numbers<[1], [0], [0], [1], [0, 0, 1, 1], [], []>, precision = #tpu.contract_precision<fp32>} : vector<256x8xf32>, vector<8x32xf32>, vector<256x32xf32> -> vector<256x32xf32>
    %c0_3 = arith.constant 0 : index
    %c0_4 = arith.constant 0 : index
    %3 = vector.load %arg3[%c0_3, %c0_4] : memref<256x32xf32, #tpu.memory_space<vmem>>, vector<256x32xf32>
    tpu.vector_store %arg3[%c0_3, %c0_4], %2 {strides = array<i32>} : memref<256x32xf32, #tpu.memory_space<vmem>>, vector<256x32xf32>,
    return
  }
  func.func @transform_0(%arg0: i32) -> (i32, i32) {
    %c0_i32 = arith.constant 0 : i32
    %c0_i32_0 = arith.constant 0 : i32
    return %arg0, %c0_i32 : i32, i32
  }
  func.func @transform_1(%arg0: i32) -> (i32, i32) {
    %c0_i32 = arith.constant 0 : i32
    %c0_i32_0 = arith.constant 0 : i32
    %c0_i32_1 = arith.constant 0 : i32
    return %c0_i32, %c0_i32_0 : i32, i32
  }
  func.func @transform_2(%arg0: i32) -> (i32, i32) {
    %c0_i32 = arith.constant 0 : i32
    %c0_i32_0 = arith.constant 0 : i32
    return %arg0, %c0_i32 : i32, i32
  }
}

</mosaic_0001>

<llo_original>
// kernel: _resize_all_patches.1
$region0: #{_resize_all_patches.1}
  #allocation0 [shape = 'u32[]', space=smem, size = 0x4, offset = 0x4, fixed_abs, tag = 'smem constant byte address 0x4 - core index']
  #allocation1 [shape = 'u32[144,128]{1,0:T(1,128)}', space=vmem, size = 0x12000, scoped, tag = 'internal scratch']
  %s0 = inlined_call_operand.vmem [shape: f32[256,8], index: 0, kind: input, shape index: {}]
  %s1 = inlined_call_operand.vmem [shape: f32[8,32], index: 1, kind: input, shape index: {}]
  %s2 = inlined_call_operand.vmem [shape: f32[256,32], index: 2, kind: output, shape index: {}]
  %s3 = sld [smem:[#allocation0]]
  $region18: #{_resize_all_patches.1} parent=0
    _
  %s5 = ssub.s32 1, %s3
  %s6 = scalar_select 0, %s5, %s3
  // Predicated region
  $region2: #{_resize_all_patches.1} parent=0 // pred_check
    _
  $region3: #{_resize_all_patches.1} parent=0 // pred_check_branch
    %8 = sbr.rel (0) target = $region5
  $region4: #{_resize_all_patches.1} parent=0 // pred_region
    _
  $region5: #{_resize_all_patches.1} parent=0 // pred_fallthru
    _
  // Predicated region
  $region6: #{_resize_all_patches.1} parent=0 // pred_check
    _
  $region7: #{_resize_all_patches.1} parent=0 // pred_check_branch
    %10 = sbr.rel (0) target = $region9
  $region8: #{_resize_all_patches.1} parent=0 // pred_region
    _
  $region9: #{_resize_all_patches.1} parent=0 // pred_fallthru
    _
  %v11 = vld [vmem:[%s0] sm:$0xff]
  %v12 = vld [vmem:[%s0 + $0x8] sm:$0xff]
  %v13 = vld [vmem:[%s0 + $0x10] sm:$0xff]
  %v14 = vld [vmem:[%s0 + $0x18] sm:$0xff]
  %v15 = vld [vmem:[%s0 + $0x20] sm:$0xff]
  %v16 = vld [vmem:[%s0 + $0x28] sm:$0xff]
  %v17 = vld [vmem:[%s0 + $0x30] sm:$0xff]
  %v18 = vld [vmem:[%s0 + $0x38] sm:$0xff]
  %v19 = vld [vmem:[%s0 + $0x40] sm:$0xff]
  %v20 = vld [vmem:[%s0 + $0x48] sm:$0xff]
  %v21 = vld [vmem:[%s0 + $0x50] sm:$0xff]
  %v22 = vld [vmem:[%s0 + $0x58] sm:$0xff]
  %v23 = vld [vmem:[%s0 + $0x60] sm:$0xff]
  %v24 = vld [vmem:[%s0 + $0x68] sm:$0xff]
  %v25 = vld [vmem:[%s0 + $0x70] sm:$0xff]
  %v26 = vld [vmem:[%s0 + $0x78] sm:$0xff]
  %v27 = vld [vmem:[%s0 + $0x80] sm:$0xff]
  %v28 = vld [vmem:[%s0 + $0x88] sm:$0xff]
  %v29 = vld [vmem:[%s0 + $0x90] sm:$0xff]
  %v30 = vld [vmem:[%s0 + $0x98] sm:$0xff]
  %v31 = vld [vmem:[%s0 + $0xa0] sm:$0xff]
  %v32 = vld [vmem:[%s0 + $0xa8] sm:$0xff]
  %v33 = vld [vmem:[%s0 + $0xb0] sm:$0xff]
  %v34 = vld [vmem:[%s0 + $0xb8] sm:$0xff]
  %v35 = vld [vmem:[%s0 + $0xc0] sm:$0xff]
  %v36 = vld [vmem:[%s0 + $0xc8] sm:$0xff]
  %v37 = vld [vmem:[%s0 + $0xd0] sm:$0xff]
  %v38 = vld [vmem:[%s0 + $0xd8] sm:$0xff]
  %v39 = vld [vmem:[%s0 + $0xe0] sm:$0xff]
  %v40 = vld [vmem:[%s0 + $0xe8] sm:$0xff]
  %v41 = vld [vmem:[%s0 + $0xf0] sm:$0xff]
  %v42 = vld [vmem:[%s0 + $0xf8] sm:$0xff]
  %v43 = vld [vmem:[%s1] sm:$0xff]
  %vm44 = vcmask 64512
  %v46 = vsel %vm44, %v11, 0
  %v49 = vsel %vm44, %v12, 0
  %v52 = vsel %vm44, %v13, 0
  %v55 = vsel %vm44, %v14, 0
  %v58 = vsel %vm44, %v15, 0
  %v61 = vsel %vm44, %v16, 0
  %v64 = vsel %vm44, %v17, 0
  %v67 = vsel %vm44, %v18, 0
  %v70 = vsel %vm44, %v19, 0
  %v73 = vsel %vm44, %v20, 0
  %v76 = vsel %vm44, %v21, 0
  %v79 = vsel %vm44, %v22, 0
  %v82 = vsel %vm44, %v23, 0
  %v85 = vsel %vm44, %v24, 0
  %v88 = vsel %vm44, %v25, 0
  %v91 = vsel %vm44, %v26, 0
  %v94 = vsel %vm44, %v27, 0
  %v97 = vsel %vm44, %v28, 0
  %v100 = vsel %vm44, %v29, 0
  %v103 = vsel %vm44, %v30, 0
  %v106 = vsel %vm44, %v31, 0
  %v109 = vsel %vm44, %v32, 0
  %v112 = vsel %vm44, %v33, 0
  %v115 = vsel %vm44, %v34, 0
  %v118 = vsel %vm44, %v35, 0
  %v121 = vsel %vm44, %v36, 0
  %v124 = vsel %vm44, %v37, 0
  %v127 = vsel %vm44, %v38, 0
  %v130 = vsel %vm44, %v39, 0
  %v133 = vsel %vm44, %v40, 0
  %v136 = vsel %vm44, %v41, 0
  %v139 = vsel %vm44, %v42, 0
  %141 = vmatprep.subr.mxu0 0.0
  %v142 = vand.u32 %v43, 4294901760
  %143 = vmatpush1.msra.mxu0 %v142
  %144 = vmatprep.subr.mxu0 0.0
  %145 = vmatpush1.msra.mxu0 0.0
  %146 = vmatprep.subr.mxu0 0.0
  %147 = vmatpush1.msra.mxu0 0.0
  %148 = vmatprep.subr.mxu0 0.0
  %149 = vmatpush1.msra.mxu0 0.0
  %150 = vmatprep.subr.mxu0 0.0
  %151 = vmatpush1.msra.mxu0 0.0
  %152 = vmatprep.subr.mxu0 0.0
  %153 = vmatpush1.msra.mxu0 0.0
  %154 = vmatprep.subr.mxu0 0.0
  %155 = vmatpush1.msra.mxu0 0.0
  %156 = vmatprep.subr.mxu0 0.0
  %157 = vmatpush1.msra.mxu0 0.0
  %158 = vmatprep.subr.mxu0 0.0
  %159 = vmatpush1.msra.mxu0 0.0
  %160 = vmatprep.subr.mxu0 0.0
  %161 = vmatpush1.msra.mxu0 0.0
  %162 = vmatprep.subr.mxu0 0.0
  %163 = vmatpush1.msra.mxu0 0.0
  %164 = vmatprep.subr.mxu0 0.0
  %165 = vmatpush1.msra.mxu0 0.0
  %166 = vmatprep.subr.mxu0 0.0
  %167 = vmatpush1.msra.mxu0 0.0
  %168 = vmatprep.subr.mxu0 0.0
  %169 = vmatpush1.msra.mxu0 0.0
  %170 = vmatprep.subr.mxu0 0.0
  %171 = vmatpush1.msra.mxu0 0.0
  %172 = vmatprep.subr.mxu0 0.0
  %173 = vmatpush1.msra.mxu0 0.0
  %174 = vmatprep.subr.mxu0 0.0
  %175 = vmatpush1.msra.mxu0 0.0
  %176 = vmatprep.subr.mxu0 0.0
  %177 = vmatpush1.msra.mxu0 0.0
  %178 = vmatprep.subr.mxu0 0.0
  %179 = vmatpush1.msra.mxu0 0.0
  %180 = vmatprep.subr.mxu0 0.0
  %181 = vmatpush1.msra.mxu0 0.0
  %182 = vmatprep.subr.mxu0 0.0
  %183 = vmatpush1.msra.mxu0 0.0
  %184 = vmatprep.subr.mxu0 0.0
  %185 = vmatpush1.msra.mxu0 0.0
  %186 = vmatprep.subr.mxu0 0.0
  %187 = vmatpush1.msra.mxu0 0.0
  %188 = vmatprep.subr.mxu0 0.0
  %189 = vmatpush1.msra.mxu0 0.0
  %190 = vmatprep.subr.mxu0 0.0
  %191 = vmatpush1.msra.mxu0 0.0
  %192 = vmatprep.subr.mxu0 0.0
  %193 = vmatpush1.msra.mxu0 0.0
  %194 = vmatprep.subr.mxu0 0.0
  %195 = vmatpush1.msra.mxu0 0.0
  %196 = vmatprep.subr.mxu0 0.0
  %197 = vmatpush1.msra.mxu0 0.0
  %198 = vmatprep.subr.mxu0 0.0
  %199 = vmatpush1.msra.mxu0 0.0
  %200 = vmatprep.subr.mxu0 0.0
  %201 = vmatpush1.msra.mxu0 0.0
  %202 = vmatprep.subr.mxu0 0.0
  %203 = vmatpush1.msra.mxu0 0.0
  %204 = vmatprep.subr.mxu0 0.0
  %205 = vmatpush1.msra.mxu0 0.0
  %206 = vmatprep.mubr.f32.mxu0 0.0
  %v207 = vand.u32 %v46, 4294901760
  %v208 = vsub.f32 %v46, %v207
  %v209 = vand.u32 %v208, 4294901760
  %v210 = vsub.f32 %v208, %v209
  %v211 = vand.u32 %v210, 4294901760
  %212 = vmatmul.mubr.f32.gmra.mrb[0].mxu0 %v211
  %v213 = vpop.f32.mrb[0].mxu0
  %v214 = vadd.f32 0.0, %v213
  %v215 = vpop.f32.mrb[0].mxu0
  %216 = vmatprep.mubr.f32.mxu0 0.0
  %v217 = vand.u32 %v49, 4294901760
  %v218 = vsub.f32 %v49, %v217
  %v219 = vand.u32 %v218, 4294901760
  %v220 = vsub.f32 %v218, %v219
  %v221 = vand.u32 %v220, 4294901760
  %222 = vmatmul.mubr.f32.gmra.mrb[0].mxu0 %v221
  %v223 = vpop.f32.mrb[0].mxu0
  %v224 = vadd.f32 0.0, %v223
  %v225 = vpop.f32.mrb[0].mxu0
  %226 = vmatprep.mubr.f32.mxu0 0.0
  %v227 = vand.u32 %v52, 4294901760
  %v228 = vsub.f32 %v52, %v227
  %v229 = vand.u32 %v228, 4294901760
  %v230 = vsub.f32 %v228, %v229
  %v231 = vand.u32 %v230, 4294901760
  %232 = vmatmul.mubr.f32.gmra.mrb[0].mxu0 %v231
  %v233 = vpop.f32.mrb[0].mxu0
  %v234 = vadd.f32 0.0, %v233
  %v235 = vpop.f32.mrb[0].mxu0
  %236 = vmatprep.mubr.f32.mxu0 0.0
  %v237 = vand.u32 %v55, 4294901760
  %v238 = vsub.f32 %v55, %v237
  %v239 = vand.u32 %v238, 4294901760
  %v240 = vsub.f32 %v238, %v239
  %v241 = vand.u32 %v240, 4294901760
  %242 = vmatmul.mubr.f32.gmra.mrb[0].mxu0 %v241
  %v243 = vpop.f32.mrb[0].mxu0
  %v244 = vadd.f32 0.0, %v243
  %v245 = vpop.f32.mrb[0].mxu0
  %246 = vmatprep.mubr.f32.mxu0 0.0
  %v247 = vand.u32 %v58, 4294901760
  %v248 = vsub.f32 %v58, %v247
  %v249 = vand.u32 %v248, 4294901760
  %v250 = vsub.f32 %v248, %v249
  %v251 = vand.u32 %v250, 4294901760
  %252 = vmatmul.mubr.f32.gmra.mrb[0].mxu0 %v251
  %v253 = vpop.f32.mrb[0].mxu0
  %v254 = vadd.f32 0.0, %v253
  %v255 = vpop.f32.mrb[0].mxu0
  %256 = vmatprep.mubr.f32.mxu0 0.0
  %v257 = vand.u32 %v61, 4294901760
  %v258 = vsub.f32 %v61, %v257
  %v259 = vand.u32 %v258, 4294901760
  %v260 = vsub.f32 %v258, %v259
  %v261 = vand.u32 %v260, 4294901760
  %262 = vmatmul.mubr.f32.gmra.mrb[0].mxu0 %v261
  %v263 = vpop.f32.mrb[0].mxu0
  %v264 = vadd.f32 0.0, %v263
  %v265 = vpop.f32.mrb[0].mxu0
  %266 = vmatprep.mubr.f32.mxu0 0.0
  %v267 = vand.u32 %v64, 4294901760
  %v268 = vsub.f32 %v64, %v267
  %v269 = vand.u32 %v268, 4294901760
  %v270 = vsub.f32 %v268, %v269
  %v271 = vand.u32 %v270, 4294901760
  %272 = vmatmul.mubr.f32.gmra.mrb[0].mxu0 %v271
  %v273 = vpop.f32.mrb[0].mxu0
  %v274 = vadd.f32 0.0, %v273
  %v275 = vpop.f32.mrb[0].mxu0
  %276 = vmatprep.mubr.f32.mxu0 0.0
  %v277 = vand.u32 %v67, 4294901760
  %v278 = vsub.f32 %v67, %v277
  %v279 = vand.u32 %v278, 4294901760
  %v280 = vsub.f32 %v278, %v279
  %v281 = vand.u32 %v280, 4294901760
  %282 = vmatmul.mubr.f32.gmra.mrb[0].mxu0 %v281
  %v283 = vpop.f32.mrb[0].mxu0
  %v284 = vadd.f32 0.0, %v283
  %v285 = vpop.f32.mrb[0].mxu0
  %286 = vmatprep.mubr.f32.mxu0 0.0
  %v287 = vand.u32 %v70, 4294901760
  %v288 = vsub.f32 %v70, %v287
  %v289 = vand.u32 %v288, 4294901760
  %v290 = vsub.f32 %v288, %v289
  %v291 = vand.u32 %v290, 4294901760
  %292 = vmatmul.mubr.f32.gmra.mrb[0].mxu0 %v291
  %v293 = vpop.f32.mrb[0].mxu0
  %v294 = vadd.f32 0.0, %v293
  %v295 = vpop.f32.mrb[0].mxu0
  %296 = vmatprep.mubr.f32.mxu0 0.0
  %v297 = vand.u32 %v73, 4294901760
  %v298 = vsub.f32 %v73, %v297
  %v299 = vand.u32 %v298, 4294901760
  %v300 = vsub.f32 %v298, %v299
  %v301 = vand.u32 %v300, 4294901760
  %302 = vmatmul.mubr.f32.gmra.mrb[0].mxu0 %v301
  %v303 = vpop.f32.mrb[0].mxu0
  %v304 = vadd.f32 0.0, %v303
  %v305 = vpop.f32.mrb[0].mxu0
  %306 = vmatprep.mubr.f32.mxu0 0.0
  %v307 = vand.u32 %v76, 4294901760
  %v308 = vsub.f32 %v76, %v307
  %v309 = vand.u32 %v308, 4294901760
  %v310 = vsub.f32 %v308, %v309
  %v311 = vand.u32 %v310, 4294901760
  %312 = vmatmul.mubr.f32.gmra.mrb[0].mxu0 %v311
  %v313 = vpop.f32.mrb[0].mxu0
  %v314 = vadd.f32 0.0, %v313
  %v315 = vpop.f32.mrb[0].mxu0
  %316 = vmatprep.mubr.f32.mxu0 0.0
  %v317 = vand.u32 %v79, 4294901760
  %v318 = vsub.f32 %v79, %v317
  %v319 = vand.u32 %v318, 4294901760
  %v320 = vsub.f32 %v318, %v319
  %v321 = vand.u32 %v320, 4294901760
  %322 = vmatmul.mubr.f32.gmra.mrb[0].mxu0 %v321
  %v323 = vpop.f32.mrb[0].mxu0
  %v324 = vadd.f32 0.0, %v323
  %v325 = vpop.f32.mrb[0].mxu0
  %326 = vmatprep.mubr.f32.mxu0 0.0
  %v327 = vand.u32 %v82, 4294901760
  %v328 = vsub.f32 %v82, %v327
  %v329 = vand.u32 %v328, 4294901760
  %v330 = vsub.f32 %v328, %v329
  %v331 = vand.u32 %v330, 4294901760
  %332 = vmatmul.mubr.f32.gmra.mrb[0].mxu0 %v331
  %v333 = vpop.f32.mrb[0].mxu0
  %v334 = vadd.f32 0.0, %v333
  %v335 = vpop.f32.mrb[0].mxu0
  %336 = vmatprep.mubr.f32.mxu0 0.0
  %v337 = vand.u32 %v85, 4294901760
  %v338 = vsub.f32 %v85, %v337
  %v339 = vand.u32 %v338, 4294901760
  %v340 = vsub.f32 %v338, %v339
  %v341 = vand.u32 %v340, 4294901760
  %342 = vmatmul.mubr.f32.gmra.mrb[0].mxu0 %v341
  %v343 = vpop.f32.mrb[0].mxu0
  %v344 = vadd.f32 0.0, %v343
  %v345 = vpop.f32.mrb[0].mxu0
  %346 = vmatprep.mubr.f32.mxu0 0.0
  %v347 = vand.u32 %v88, 4294901760
  %v348 = vsub.f32 %v88, %v347
  %v349 = vand.u32 %v348, 4294901760
  %v350 = vsub.f32 %v348, %v349
  %v351 = vand.u32 %v350, 4294901760
  %352 = vmatmul.mubr.f32.gmra.mrb[0].mxu0 %v351
  %v353 = vpop.f32.mrb[0].mxu0
  %v354 = vadd.f32 0.0, %v353
  %v355 = vpop.f32.mrb[0].mxu0
  %356 = vmatprep.mubr.f32.mxu0 0.0
  %v357 = vand.u32 %v91, 4294901760
  %v358 = vsub.f32 %v91, %v357
  %v359 = vand.u32 %v358, 4294901760
  %v360 = vsub.f32 %v358, %v359
  %v361 = vand.u32 %v360, 4294901760
  %362 = vmatmul.mubr.f32.gmra.mrb[0].mxu0 %v361
  %v363 = vpop.f32.mrb[0].mxu0
  %v364 = vadd.f32 0.0, %v363
  %v365 = vpop.f32.mrb[0].mxu0
  %366 = vmatprep.mubr.f32.mxu0 0.0
  %v367 = vand.u32 %v94, 4294901760
  %v368 = vsub.f32 %v94, %v367
  %v369 = vand.u32 %v368, 4294901760
  %v370 = vsub.f32 %v368, %v369
  %v371 = vand.u32 %v370, 4294901760
  %372 = vmatmul.mubr.f32.gmra.mrb[0].mxu0 %v371
  %v373 = vpop.f32.mrb[0].mxu0
  %v374 = vadd.f32 0.0, %v373
  %v375 = vpop.f32.mrb[0].mxu0
  %376 = vmatprep.mubr.f32.mxu0 0.0
  %v377 = vand.u32 %v97, 4294901760
  %v378 = vsub.f32 %v97, %v377
  %v379 = vand.u32 %v378, 4294901760
  %v380 = vsub.f32 %v378, %v379
  %v381 = vand.u32 %v380, 4294901760
  %382 = vmatmul.mubr.f32.gmra.mrb[0].mxu0 %v381
  %v383 = vpop.f32.mrb[0].mxu0
  %v384 = vadd.f32 0.0, %v383
  %v385 = vpop.f32.mrb[0].mxu0
  %386 = vmatprep.mubr.f32.mxu0 0.0
  %v387 = vand.u32 %v100, 4294901760
  %v388 = vsub.f32 %v100, %v387
  %v389 = vand.u32 %v388, 4294901760
  %v390 = vsub.f32 %v388, %v389
  %v391 = vand.u32 %v390, 4294901760
  %392 = vmatmul.mubr.f32.gmra.mrb[0].mxu0 %v391
  %v393 = vpop.f32.mrb[0].mxu0
  %v394 = vadd.f32 0.0, %v393
  %v395 = vpop.f32.mrb[0].mxu0
  %396 = vmatprep.mubr.f32.mxu0 0.0
  %v397 = vand.u32 %v103, 4294901760
  %v398 = vsub.f32 %v103, %v397
  %v399 = vand.u32 %v398, 4294901760
  %v400 = vsub.f32 %v398, %v399
  %v401 = vand.u32 %v400, 4294901760
  %402 = vmatmul.mubr.f32.gmra.mrb[0].mxu0 %v401
  %v403 = vpop.f32.mrb[0].mxu0
  %v404 = vadd.f32 0.0, %v403
  %v405 = vpop.f32.mrb[0].mxu0
  %406 = vmatprep.mubr.f32.mxu0 0.0
  %v407 = vand.u32 %v106, 4294901760
  %v408 = vsub.f32 %v106, %v407
  %v409 = vand.u32 %v408, 4294901760
  %v410 = vsub.f32 %v408, %v409
  %v411 = vand.u32 %v410, 4294901760
  %412 = vmatmul.mubr.f32.gmra.mrb[0].mxu0 %v411
  %v413 = vpop.f32.mrb[0].mxu0
  %v414 = vadd.f32 0.0, %v413
  %v415 = vpop.f32.mrb[0].mxu0
  %416 = vmatprep.mubr.f32.mxu0 0.0
  %v417 = vand.u32 %v109, 4294901760
  %v418 = vsub.f32 %v109, %v417
  %v419 = vand.u32 %v418, 4294901760
  %v420 = vsub.f32 %v418, %v419
  %v421 = vand.u32 %v420, 4294901760
  %422 = vmatmul.mubr.f32.gmra.mrb[0].mxu0 %v421
  %v423 = vpop.f32.mrb[0].mxu0
  %v424 = vadd.f32 0.0, %v423
  %v425 = vpop.f32.mrb[0].mxu0
  %426 = vmatprep.mubr.f32.mxu0 0.0
  %v427 = vand.u32 %v112, 4294901760
  %v428 = vsub.f32 %v112, %v427
  %v429 = vand.u32 %v428, 4294901760
  %v430 = vsub.f32 %v428, %v429
  %v431 = vand.u32 %v430, 4294901760
  %432 = vmatmul.mubr.f32.gmra.mrb[0].mxu0 %v431
  %v433 = vpop.f32.mrb[0].mxu0
  %v434 = vadd.f32 0.0, %v433
  %v435 = vpop.f32.mrb[0].mxu0
  %436 = vmatprep.mubr.f32.mxu0 0.0
  %v437 = vand.u32 %v115, 4294901760
  %v438 = vsub.f32 %v115, %v437
  %v439 = vand.u32 %v438, 4294901760
  %v440 = vsub.f32 %v438, %v439
  %v441 = vand.u32 %v440, 4294901760
  %442 = vmatmul.mubr.f32.gmra.mrb[0].mxu0 %v441
  %v443 = vpop.f32.mrb[0].mxu0
  %v444 = vadd.f32 0.0, %v443
  %v445 = vpop.f32.mrb[0].mxu0
  %446 = vmatprep.mubr.f32.mxu0 0.0
  %v447 = vand.u32 %v118, 4294901760
  %v448 = vsub.f32 %v118, %v447
  %v449 = vand.u32 %v448, 4294901760
  %v450 = vsub.f32 %v448, %v449
  %v451 = vand.u32 %v450, 4294901760
  %452 = vmatmul.mubr.f32.gmra.mrb[0].mxu0 %v451
  %v453 = vpop.f32.mrb[0].mxu0
  %v454 = vadd.f32 0.0, %v453
  %v455 = vpop.f32.mrb[0].mxu0
  %456 = vmatprep.mubr.f32.mxu0 0.0
  %v457 = vand.u32 %v121, 4294901760
  %v458 = vsub.f32 %v121, %v457
  %v459 = vand.u32 %v458, 4294901760
  %v460 = vsub.f32 %v458, %v459
  %v461 = vand.u32 %v460, 4294901760
  %462 = vmatmul.mubr.f32.gmra.mrb[0].mxu0 %v461
  %v463 = vpop.f32.mrb[0].mxu0
  %v464 = vadd.f32 0.0, %v463
  %v465 = vpop.f32.mrb[0].mxu0
  %466 = vmatprep.mubr.f32.mxu0 0.0
  %v467 = vand.u32 %v124, 4294901760
  %v468 = vsub.f32 %v124, %v467
  %v469 = vand.u32 %v468, 4294901760
  %v470 = vsub.f32 %v468, %v469
  %v471 = vand.u32 %v470, 4294901760
  %472 = vmatmul.mubr.f32.gmra.mrb[0].mxu0 %v471
  %v473 = vpop.f32.mrb[0].mxu0
  %v474 = vadd.f32 0.0, %v473
  %v475 = vpop.f32.mrb[0].mxu0
  %476 = vmatprep.mubr.f32.mxu0 0.0
  %v477 = vand.u32 %v127, 4294901760
  %v478 = vsub.f32 %v127, %v477
  %v479 = vand.u32 %v478, 4294901760
  %v480 = vsub.f32 %v478, %v479
  %v481 = vand.u32 %v480, 4294901760
  %482 = vmatmul.mubr.f32.gmra.mrb[0].mxu0 %v481
  %v483 = vpop.f32.mrb[0].mxu0
  %v484 = vadd.f32 0.0, %v483
  %v485 = vpop.f32.mrb[0].mxu0
  %486 = vmatprep.mubr.f32.mxu0 0.0
  %v487 = vand.u32 %v130, 4294901760
  %v488 = vsub.f32 %v130, %v487
  %v489 = vand.u32 %v488, 4294901760
  %v490 = vsub.f32 %v488, %v489
  %v491 = vand.u32 %v490, 4294901760
  %492 = vmatmul.mubr.f32.gmra.mrb[0].mxu0 %v491
  %v493 = vpop.f32.mrb[0].mxu0
  %v494 = vadd.f32 0.0, %v493
  %v495 = vpop.f32.mrb[0].mxu0
  %496 = vmatprep.mubr.f32.mxu0 0.0
  %v497 = vand.u32 %v133, 4294901760
  %v498 = vsub.f32 %v133, %v497
  %v499 = vand.u32 %v498, 4294901760
  %v500 = vsub.f32 %v498, %v499
  %v501 = vand.u32 %v500, 4294901760
  %502 = vmatmul.mubr.f32.gmra.mrb[0].mxu0 %v501
  %v503 = vpop.f32.mrb[0].mxu0
  %v504 = vadd.f32 0.0, %v503
  %v505 = vpop.f32.mrb[0].mxu0
  %506 = vmatprep.mubr.f32.mxu0 0.0
  %v507 = vand.u32 %v136, 4294901760
  %v508 = vsub.f32 %v136, %v507
  %v509 = vand.u32 %v508, 4294901760
  %v510 = vsub.f32 %v508, %v509
  %v511 = vand.u32 %v510, 4294901760
  %512 = vmatmul.mubr.f32.gmra.mrb[0].mxu0 %v511
  %v513 = vpop.f32.mrb[0].mxu0
  %v514 = vadd.f32 0.0, %v513
  %v515 = vpop.f32.mrb[0].mxu0
  %516 = vmatprep.mubr.f32.mxu0 0.0
  %v517 = vand.u32 %v139, 4294901760
  %v518 = vsub.f32 %v139, %v517
  %v519 = vand.u32 %v518, 4294901760
  %v520 = vsub.f32 %v518, %v519
  %v521 = vand.u32 %v520, 4294901760
  %522 = vmatmul.mubr.f32.gmra.mrb[0].mxu0 %v521
  %v523 = vpop.f32.mrb[0].mxu0
  %v524 = vadd.f32 0.0, %v523
  %v525 = vpop.f32.mrb[0].mxu0
  %526 = vdwg.mxu0
  %527 = vmatprep.subr.mxu0 0.0
  %v528 = vand.u32 %v43, 4294901760
  %v529 = vsub.f32 %v43, %v528
  %v530 = vand.u32 %v529, 4294901760
  %v531 = vsub.f32 %v529, %v530
  %v532 = vand.u32 %v531, 4294901760
  %533 = vmatpush1.msra.mxu0 %v532
  %534 = vmatprep.subr.mxu0 0.0
  %535 = vmatpush1.msra.mxu0 0.0
  %536 = vmatprep.subr.mxu0 0.0
  %537 = vmatpush1.msra.mxu0 0.0
  %538 = vmatprep.subr.mxu0 0.0
  %539 = vmatpush1.msra.mxu0 0.0
  %540 = vmatprep.subr.mxu0 0.0
  %541 = vmatpush1.msra.mxu0 0.0
  %542 = vmatprep.subr.mxu0 0.0
  %543 = vmatpush1.msra.mxu0 0.0
  %544 = vmatprep.subr.mxu0 0.0
  %545 = vmatpush1.msra.mxu0 0.0
  %546 = vmatprep.subr.mxu0 0.0
  %547 = vmatpush1.msra.mxu0 0.0
  %548 = vmatprep.subr.mxu0 0.0
  %549 = vmatpush1.msra.mxu0 0.0
  %550 = vmatprep.subr.mxu0 0.0
  %551 = vmatpush1.msra.mxu0 0.0
  %552 = vmatprep.subr.mxu0 0.0
  %553 = vmatpush1.msra.mxu0 0.0
  %554 = vmatprep.subr.mxu0 0.0
  %555 = vmatpush1.msra.mxu0 0.0
  %556 = vmatprep.subr.mxu0 0.0
  %557 = vmatpush1.msra.mxu0 0.0
  %558 = vmatprep.subr.mxu0 0.0
  %559 = vmatpush1.msra.mxu0 0.0
  %560 = vmatprep.subr.mxu0 0.0
  %561 = vmatpush1.msra.mxu0 0.0
  %562 = vmatprep.subr.mxu0 0.0
  %563 = vmatpush1.msra.mxu0 0.0
  %564 = vmatprep.subr.mxu0 0.0
  %565 = vmatpush1.msra.mxu0 0.0
  %566 = vmatprep.subr.mxu0 0.0
  %567 = vmatpush1.msra.mxu0 0.0
  %568 = vmatprep.subr.mxu0 0.0
  %569 = vmatpush1.msra.mxu0 0.0
  %570 = vmatprep.subr.mxu0 0.0
  %571 = vmatpush1.msra.mxu0 0.0
  %572 = vmatprep.subr.mxu0 0.0
  %573 = vmatpush1.msra.mxu0 0.0
  %574 = vmatprep.subr.mxu0 0.0
  %575 = vmatpush1.msra.mxu0 0.0
  %576 = vmatprep.subr.mxu0 0.0
  %577 = vmatpush1.msra.mxu0 0.0
  %578 = vmatprep.subr.mxu0 0.0
  %579 = vmatpush1.msra.mxu0 0.0
  %580 = vmatprep.subr.mxu0 0.0
  %581 = vmatpush1.msra.mxu0 0.0
  %582 = vmatprep.subr.mxu0 0.0
  %583 = vmatpush1.msra.mxu0 0.0
  %584 = vmatprep.subr.mxu0 0.0
  %585 = vmatpush1.msra.mxu0 0.0
  %586 = vmatprep.subr.mxu0 0.0
  %587 = vmatpush1.msra.mxu0 0.0
  %588 = vmatprep.subr.mxu0 0.0
  %589 = vmatpush1.msra.mxu0 0.0
  %590 = vmatprep.subr.mxu0 0.0
  %591 = vmatpush1.msra.mxu0 0.0
  %592 = vmatprep.subr.mxu0 0.0
  %593 = vmatpush1.msra.mxu0 0.0
  %594 = vmatprep.subr.mxu0 0.0
  %595 = vmatpush1.msra.mxu0 0.0
  %596 = vmatprep.mubr.f32.mxu0 0.0
  %v597 = vand.u32 %v46, 4294901760
  %598 = vmatmul.mubr.f32.gmra.mrb[0].mxu0 %v597
  %v599 = vpop.f32.mrb[0].mxu0
  %v600 = vadd.f32 %v214, %v599
  %v601 = vpop.f32.mrb[0].mxu0
  %602 = vmatprep.mubr.f32.mxu0 0.0
  %v603 = vand.u32 %v49, 4294901760
  %604 = vmatmul.mubr.f32.gmra.mrb[0].mxu0 %v603
  %v605 = vpop.f32.mrb[0].mxu0
  %v606 = vadd.f32 %v224, %v605
  %v607 = vpop.f32.mrb[0].mxu0
  %608 = vmatprep.mubr.f32.mxu0 0.0
  %v609 = vand.u32 %v52, 4294901760
  %610 = vmatmul.mubr.f32.gmra.mrb[0].mxu0 %v609
  %v611 = vpop.f32.mrb[0].mxu0
  %v612 = vadd.f32 %v234, %v611
  %v613 = vpop.f32.mrb[0].mxu0
  %614 = vmatprep.mubr.f32.mxu0 0.0
  %v615 = vand.u32 %v55, 4294901760
  %616 = vmatmul.mubr.f32.gmra.mrb[0].mxu0 %v615
  %v617 = vpop.f32.mrb[0].mxu0
  %v618 = vadd.f32 %v244, %v617
  %v619 = vpop.f32.mrb[0].mxu0
  %620 = vmatprep.mubr.f32.mxu0 0.0
  %v621 = vand.u32 %v58, 4294901760
  %622 = vmatmul.mubr.f32.gmra.mrb[0].mxu0 %v621
  %v623 = vpop.f32.mrb[0].mxu0
  %v624 = vadd.f32 %v254, %v623
  %v625 = vpop.f32.mrb[0].mxu0
  %626 = vmatprep.mubr.f32.mxu0 0.0
  %v627 = vand.u32 %v61, 4294901760
  %628 = vmatmul.mubr.f32.gmra.mrb[0].mxu0 %v627
  %v629 = vpop.f32.mrb[0].mxu0
  %v630 = vadd.f32 %v264, %v629
  %v631 = vpop.f32.mrb[0].mxu0
  %632 = vmatprep.mubr.f32.mxu0 0.0
  %v633 = vand.u32 %v64, 4294901760
  %634 = vmatmul.mubr.f32.gmra.mrb[0].mxu0 %v633
  %v635 = vpop.f32.mrb[0].mxu0
  %v636 = vadd.f32 %v274, %v635
  %v637 = vpop.f32.mrb[0].mxu0
  %638 = vmatprep.mubr.f32.mxu0 0.0
  %v639 = vand.u32 %v67, 4294901760
  %640 = vmatmul.mubr.f32.gmra.mrb[0].mxu0 %v639
  %v641 = vpop.f32.mrb[0].mxu0
  %v642 = vadd.f32 %v284, %v641
  %v643 = vpop.f32.mrb[0].mxu0
  %644 = vmatprep.mubr.f32.mxu0 0.0
  %v645 = vand.u32 %v70, 4294901760
  %646 = vmatmul.mubr.f32.gmra.mrb[0].mxu0 %v645
  %v647 = vpop.f32.mrb[0].mxu0
  %v648 = vadd.f32 %v294, %v647
  %v649 = vpop.f32.mrb[0].mxu0
  %650 = vmatprep.mubr.f32.mxu0 0.0
  %v651 = vand.u32 %v73, 4294901760
  %652 = vmatmul.mubr.f32.gmra.mrb[0].mxu0 %v651
  %v653 = vpop.f32.mrb[0].mxu0
  %v654 = vadd.f32 %v304, %v653
  %v655 = vpop.f32.mrb[0].mxu0
  %656 = vmatprep.mubr.f32.mxu0 0.0
  %v657 = vand.u32 %v76, 4294901760
  %658 = vmatmul.mubr.f32.gmra.mrb[0].mxu0 %v657
  %v659 = vpop.f32.mrb[0].mxu0
  %v660 = vadd.f32 %v314, %v659
  %v661 = vpop.f32.mrb[0].mxu0
  %662 = vmatprep.mubr.f32.mxu0 0.0
  %v663 = vand.u32 %v79, 4294901760
  %664 = vmatmul.mubr.f32.gmra.mrb[0].mxu0 %v663
  %v665 = vpop.f32.mrb[0].mxu0
  %v666 = vadd.f32 %v324, %v665
  %v667 = vpop.f32.mrb[0].mxu0
  %668 = vmatprep.mubr.f32.mxu0 0.0
  %v669 = vand.u32 %v82, 4294901760
  %670 = vmatmul.mubr.f32.gmra.mrb[0].mxu0 %v669
  %v671 = vpop.f32.mrb[0].mxu0
  %v672 = vadd.f32 %v334, %v671
  %v673 = vpop.f32.mrb[0].mxu0
  %674 = vmatprep.mubr.f32.mxu0 0.0
  %v675 = vand.u32 %v85, 4294901760
  %676 = vmatmul.mubr.f32.gmra.mrb[0].mxu0 %v675
  %v677 = vpop.f32.mrb[0].mxu0
  %v678 = vadd.f32 %v344, %v677
  %v679 = vpop.f32.mrb[0].mxu0
  %680 = vmatprep.mubr.f32.mxu0 0.0
  %v681 = vand.u32 %v88, 4294901760
  %682 = vmatmul.mubr.f32.gmra.mrb[0].mxu0 %v681
  %v683 = vpop.f32.mrb[0].mxu0
  %v684 = vadd.f32 %v354, %v683
  %v685 = vpop.f32.mrb[0].mxu0
  %686 = vmatprep.mubr.f32.mxu0 0.0
  %v687 = vand.u32 %v91, 4294901760
  %688 = vmatmul.mubr.f32.gmra.mrb[0].mxu0 %v687
  %v689 = vpop.f32.mrb[0].mxu0
  %v690 = vadd.f32 %v364, %v689
  %v691 = vpop.f32.mrb[0].mxu0
  %692 = vmatprep.mubr.f32.mxu0 0.0
  %v693 = vand.u32 %v94, 4294901760
  %694 = vmatmul.mubr.f32.gmra.mrb[0].mxu0 %v693
  %v695 = vpop.f32.mrb[0].mxu0
  %v696 = vadd.f32 %v374, %v695
  %v697 = vpop.f32.mrb[0].mxu0
  %698 = vmatprep.mubr.f32.mxu0 0.0
  %v699 = vand.u32 %v97, 4294901760
  %700 = vmatmul.mubr.f32.gmra.mrb[0].mxu0 %v699
  %v701 = vpop.f32.mrb[0].mxu0
  %v702 = vadd.f32 %v384, %v701
  %v703 = vpop.f32.mrb[0].mxu0
  %704 = vmatprep.mubr.f32.mxu0 0.0
  %v705 = vand.u32 %v100, 4294901760
  %706 = vmatmul.mubr.f32.gmra.mrb[0].mxu0 %v705
  %v707 = vpop.f32.mrb[0].mxu0
  %v708 = vadd.f32 %v394, %v707
  %v709 = vpop.f32.mrb[0].mxu0
  %710 = vmatprep.mubr.f32.mxu0 0.0
  %v711 = vand.u32 %v103, 4294901760
  %712 = vmatmul.mubr.f32.gmra.mrb[0].mxu0 %v711
  %v713 = vpop.f32.mrb[0].mxu0
  %v714 = vadd.f32 %v404, %v713
  %v715 = vpop.f32.mrb[0].mxu0
  %716 = vmatprep.mubr.f32.mxu0 0.0
  %v717 = vand.u32 %v106, 4294901760
  %718 = vmatmul.mubr.f32.gmra.mrb[0].mxu0 %v717
  %v719 = vpop.f32.mrb[0].mxu0
  %v720 = vadd.f32 %v414, %v719
  %v721 = vpop.f32.mrb[0].mxu0
  %722 = vmatprep.mubr.f32.mxu0 0.0
  %v723 = vand.u32 %v109, 4294901760
  %724 = vmatmul.mubr.f32.gmra.mrb[0].mxu0 %v723
  %v725 = vpop.f32.mrb[0].mxu0
  %v726 = vadd.f32 %v424, %v725
  %v727 = vpop.f32.mrb[0].mxu0
  %728 = vmatprep.mubr.f32.mxu0 0.0
  %v729 = vand.u32 %v112, 4294901760
  %730 = vmatmul.mubr.f32.gmra.mrb[0].mxu0 %v729
  %v731 = vpop.f32.mrb[0].mxu0
  %v732 = vadd.f32 %v434, %v731
  %v733 = vpop.f32.mrb[0].mxu0
  %734 = vmatprep.mubr.f32.mxu0 0.0
  %v735 = vand.u32 %v115, 4294901760
  %736 = vmatmul.mubr.f32.gmra.mrb[0].mxu0 %v735
  %v737 = vpop.f32.mrb[0].mxu0
  %v738 = vadd.f32 %v444, %v737
  %v739 = vpop.f32.mrb[0].mxu0
  %740 = vmatprep.mubr.f32.mxu0 0.0
  %v741 = vand.u32 %v118, 4294901760
  %742 = vmatmul.mubr.f32.gmra.mrb[0].mxu0 %v741
  %v743 = vpop.f32.mrb[0].mxu0
  %v744 = vadd.f32 %v454, %v743
  %v745 = vpop.f32.mrb[0].mxu0
  %746 = vmatprep.mubr.f32.mxu0 0.0
  %v747 = vand.u32 %v121, 4294901760
  %748 = vmatmul.mubr.f32.gmra.mrb[0].mxu0 %v747
  %v749 = vpop.f32.mrb[0].mxu0
  %v750 = vadd.f32 %v464, %v749
  %v751 = vpop.f32.mrb[0].mxu0
  %752 = vmatprep.mubr.f32.mxu0 0.0
  %v753 = vand.u32 %v124, 4294901760
  %754 = vmatmul.mubr.f32.gmra.mrb[0].mxu0 %v753
  %v755 = vpop.f32.mrb[0].mxu0
  %v756 = vadd.f32 %v474, %v755
  %v757 = vpop.f32.mrb[0].mxu0
  %758 = vmatprep.mubr.f32.mxu0 0.0
  %v759 = vand.u32 %v127, 4294901760
  %760 = vmatmul.mubr.f32.gmra.mrb[0].mxu0 %v759
  %v761 = vpop.f32.mrb[0].mxu0
  %v762 = vadd.f32 %v484, %v761
  %v763 = vpop.f32.mrb[0].mxu0
  %764 = vmatprep.mubr.f32.mxu0 0.0
  %v765 = vand.u32 %v130, 4294901760
  %766 = vmatmul.mubr.f32.gmra.mrb[0].mxu0 %v765
  %v767 = vpop.f32.mrb[0].mxu0
  %v768 = vadd.f32 %v494, %v767
  %v769 = vpop.f32.mrb[0].mxu0
  %770 = vmatprep.mubr.f32.mxu0 0.0
  %v771 = vand.u32 %v133, 4294901760
  %772 = vmatmul.mubr.f32.gmra.mrb[0].mxu0 %v771
  %v773 = vpop.f32.mrb[0].mxu0
  %v774 = vadd.f32 %v504, %v773
  %v775 = vpop.f32.mrb[0].mxu0
  %776 = vmatprep.mubr.f32.mxu0 0.0
  %v777 = vand.u32 %v136, 4294901760
  %778 = vmatmul.mubr.f32.gmra.mrb[0].mxu0 %v777
  %v779 = vpop.f32.mrb[0].mxu0
  %v780 = vadd.f32 %v514, %v779
  %v781 = vpop.f32.mrb[0].mxu0
  %782 = vmatprep.mubr.f32.mxu0 0.0
  %v783 = vand.u32 %v139, 4294901760
  %784 = vmatmul.mubr.f32.gmra.mrb[0].mxu0 %v783
  %v785 = vpop.f32.mrb[0].mxu0
  %v786 = vadd.f32 %v524, %v785
  %v787 = vpop.f32.mrb[0].mxu0
  %788 = vdwg.mxu0
  %789 = vmatprep.subr.mxu0 0.0
  %v790 = vand.u32 %v43, 4294901760
  %v791 = vsub.f32 %v43, %v790
  %792 = vmatpush1.msra.mxu0 %v791
  %793 = vmatprep.subr.mxu0 0.0
  %794 = vmatpush1.msra.mxu0 0.0
  %795 = vmatprep.subr.mxu0 0.0
  %796 = vmatpush1.msra.mxu0 0.0
  %797 = vmatprep.subr.mxu0 0.0
  %798 = vmatpush1.msra.mxu0 0.0
  %799 = vmatprep.subr.mxu0 0.0
  %800 = vmatpush1.msra.mxu0 0.0
  %801 = vmatprep.subr.mxu0 0.0
  %802 = vmatpush1.msra.mxu0 0.0
  %803 = vmatprep.subr.mxu0 0.0
  %804 = vmatpush1.msra.mxu0 0.0
  %805 = vmatprep.subr.mxu0 0.0
  %806 = vmatpush1.msra.mxu0 0.0
  %807 = vmatprep.subr.mxu0 0.0
  %808 = vmatpush1.msra.mxu0 0.0
  %809 = vmatprep.subr.mxu0 0.0
  %810 = vmatpush1.msra.mxu0 0.0
  %811 = vmatprep.subr.mxu0 0.0
  %812 = vmatpush1.msra.mxu0 0.0
  %813 = vmatprep.subr.mxu0 0.0
  %814 = vmatpush1.msra.mxu0 0.0
  %815 = vmatprep.subr.mxu0 0.0
  %816 = vmatpush1.msra.mxu0 0.0
  %817 = vmatprep.subr.mxu0 0.0
  %818 = vmatpush1.msra.mxu0 0.0
  %819 = vmatprep.subr.mxu0 0.0
  %820 = vmatpush1.msra.mxu0 0.0
  %821 = vmatprep.subr.mxu0 0.0
  %822 = vmatpush1.msra.mxu0 0.0
  %823 = vmatprep.subr.mxu0 0.0
  %824 = vmatpush1.msra.mxu0 0.0
  %825 = vmatprep.subr.mxu0 0.0
  %826 = vmatpush1.msra.mxu0 0.0
  %827 = vmatprep.subr.mxu0 0.0
  %828 = vmatpush1.msra.mxu0 0.0
  %829 = vmatprep.subr.mxu0 0.0
  %830 = vmatpush1.msra.mxu0 0.0
  %831 = vmatprep.subr.mxu0 0.0
  %832 = vmatpush1.msra.mxu0 0.0
  %833 = vmatprep.subr.mxu0 0.0
  %834 = vmatpush1.msra.mxu0 0.0
  %835 = vmatprep.subr.mxu0 0.0
  %836 = vmatpush1.msra.mxu0 0.0
  %837 = vmatprep.subr.mxu0 0.0
  %838 = vmatpush1.msra.mxu0 0.0
  %839 = vmatprep.subr.mxu0 0.0
  %840 = vmatpush1.msra.mxu0 0.0
  %841 = vmatprep.subr.mxu0 0.0
  %842 = vmatpush1.msra.mxu0 0.0
  %843 = vmatprep.subr.mxu0 0.0
  %844 = vmatpush1.msra.mxu0 0.0
  %845 = vmatprep.subr.mxu0 0.0
  %846 = vmatpush1.msra.mxu0 0.0
  %847 = vmatprep.subr.mxu0 0.0
  %848 = vmatpush1.msra.mxu0 0.0
  %849 = vmatprep.subr.mxu0 0.0
  %850 = vmatpush1.msra.mxu0 0.0
  %851 = vmatprep.subr.mxu0 0.0
  %852 = vmatpush1.msra.mxu0 0.0
  %853 = vmatprep.subr.mxu0 0.0
  %854 = vmatpush1.msra.mxu0 0.0
  %855 = vmatprep.mubr.f32.mxu0 0.0
  %v856 = vand.u32 %v46, 4294901760
  %v857 = vsub.f32 %v46, %v856
  %858 = vmatmul.mubr.f32.gmra.mrb[0].mxu0 %v857
  %v859 = vpop.f32.mrb[0].mxu0
  %v860 = vadd.f32 %v600, %v859
  %v861 = vpop.f32.mrb[0].mxu0
  %862 = vmatprep.mubr.f32.mxu0 0.0
  %v863 = vand.u32 %v49, 4294901760
  %v864 = vsub.f32 %v49, %v863
  %865 = vmatmul.mubr.f32.gmra.mrb[0].mxu0 %v864
  %v866 = vpop.f32.mrb[0].mxu0
  %v867 = vadd.f32 %v606, %v866
  %v868 = vpop.f32.mrb[0].mxu0
  %869 = vmatprep.mubr.f32.mxu0 0.0
  %v870 = vand.u32 %v52, 4294901760
  %v871 = vsub.f32 %v52, %v870
  %872 = vmatmul.mubr.f32.gmra.mrb[0].mxu0 %v871
  %v873 = vpop.f32.mrb[0].mxu0
  %v874 = vadd.f32 %v612, %v873
  %v875 = vpop.f32.mrb[0].mxu0
  %876 = vmatprep.mubr.f32.mxu0 0.0
  %v877 = vand.u32 %v55, 4294901760
  %v878 = vsub.f32 %v55, %v877
  %879 = vmatmul.mubr.f32.gmra.mrb[0].mxu0 %v878
  %v880 = vpop.f32.mrb[0].mxu0
  %v881 = vadd.f32 %v618, %v880
  %v882 = vpop.f32.mrb[0].mxu0
  %883 = vmatprep.mubr.f32.mxu0 0.0
  %v884 = vand.u32 %v58, 4294901760
  %v885 = vsub.f32 %v58, %v884
  %886 = vmatmul.mubr.f32.gmra.mrb[0].mxu0 %v885
  %v887 = vpop.f32.mrb[0].mxu0
  %v888 = vadd.f32 %v624, %v887
  %v889 = vpop.f32.mrb[0].mxu0
  %890 = vmatprep.mubr.f32.mxu0 0.0
  %v891 = vand.u32 %v61, 4294901760
  %v892 = vsub.f32 %v61, %v891
  %893 = vmatmul.mubr.f32.gmra.mrb[0].mxu0 %v892
  %v894 = vpop.f32.mrb[0].mxu0
  %v895 = vadd.f32 %v630, %v894
  %v896 = vpop.f32.mrb[0].mxu0
  %897 = vmatprep.mubr.f32.mxu0 0.0
  %v898 = vand.u32 %v64, 4294901760
  %v899 = vsub.f32 %v64, %v898
  %900 = vmatmul.mubr.f32.gmra.mrb[0].mxu0 %v899
  %v901 = vpop.f32.mrb[0].mxu0
  %v902 = vadd.f32 %v636, %v901
  %v903 = vpop.f32.mrb[0].mxu0
  %904 = vmatprep.mubr.f32.mxu0 0.0
  %v905 = vand.u32 %v67, 4294901760
  %v906 = vsub.f32 %v67, %v905
  %907 = vmatmul.mubr.f32.gmra.mrb[0].mxu0 %v906
  %v908 = vpop.f32.mrb[0].mxu0
  %v909 = vadd.f32 %v642, %v908
  %v910 = vpop.f32.mrb[0].mxu0
  %911 = vmatprep.mubr.f32.mxu0 0.0
  %v912 = vand.u32 %v70, 4294901760
  %v913 = vsub.f32 %v70, %v912
  %914 = vmatmul.mubr.f32.gmra.mrb[0].mxu0 %v913
  %v915 = vpop.f32.mrb[0].mxu0
  %v916 = vadd.f32 %v648, %v915
  %v917 = vpop.f32.mrb[0].mxu0
  %918 = vmatprep.mubr.f32.mxu0 0.0
  %v919 = vand.u32 %v73, 4294901760
  %v920 = vsub.f32 %v73, %v919
  %921 = vmatmul.mubr.f32.gmra.mrb[0].mxu0 %v920
  %v922 = vpop.f32.mrb[0].mxu0
  %v923 = vadd.f32 %v654, %v922
  %v924 = vpop.f32.mrb[0].mxu0
  %925 = vmatprep.mubr.f32.mxu0 0.0
  %v926 = vand.u32 %v76, 4294901760
  %v927 = vsub.f32 %v76, %v926
  %928 = vmatmul.mubr.f32.gmra.mrb[0].mxu0 %v927
  %v929 = vpop.f32.mrb[0].mxu0
  %v930 = vadd.f32 %v660, %v929
  %v931 = vpop.f32.mrb[0].mxu0
  %932 = vmatprep.mubr.f32.mxu0 0.0
  %v933 = vand.u32 %v79, 4294901760
  %v934 = vsub.f32 %v79, %v933
  %935 = vmatmul.mubr.f32.gmra.mrb[0].mxu0 %v934
  %v936 = vpop.f32.mrb[0].mxu0
  %v937 = vadd.f32 %v666, %v936
  %v938 = vpop.f32.mrb[0].mxu0
  %939 = vmatprep.mubr.f32.mxu0 0.0
  %v940 = vand.u32 %v82, 4294901760
  %v941 = vsub.f32 %v82, %v940
  %942 = vmatmul.mubr.f32.gmra.mrb[0].mxu0 %v941
  %v943 = vpop.f32.mrb[0].mxu0
  %v944 = vadd.f32 %v672, %v943
  %v945 = vpop.f32.mrb[0].mxu0
  %946 = vmatprep.mubr.f32.mxu0 0.0
  %v947 = vand.u32 %v85, 4294901760
  %v948 = vsub.f32 %v85, %v947
  %949 = vmatmul.mubr.f32.gmra.mrb[0].mxu0 %v948
  %v950 = vpop.f32.mrb[0].mxu0
  %v951 = vadd.f32 %v678, %v950
  %v952 = vpop.f32.mrb[0].mxu0
  %953 = vmatprep.mubr.f32.mxu0 0.0
  %v954 = vand.u32 %v88, 4294901760
  %v955 = vsub.f32 %v88, %v954
  %956 = vmatmul.mubr.f32.gmra.mrb[0].mxu0 %v955
  %v957 = vpop.f32.mrb[0].mxu0
  %v958 = vadd.f32 %v684, %v957
  %v959 = vpop.f32.mrb[0].mxu0
  %960 = vmatprep.mubr.f32.mxu0 0.0
  %v961 = vand.u32 %v91, 4294901760
  %v962 = vsub.f32 %v91, %v961
  %963 = vmatmul.mubr.f32.gmra.mrb[0].mxu0 %v962
  %v964 = vpop.f32.mrb[0].mxu0
  %v965 = vadd.f32 %v690, %v964
  %v966 = vpop.f32.mrb[0].mxu0
  %967 = vmatprep.mubr.f32.mxu0 0.0
  %v968 = vand.u32 %v94, 4294901760
  %v969 = vsub.f32 %v94, %v968
  %970 = vmatmul.mubr.f32.gmra.mrb[0].mxu0 %v969
  %v971 = vpop.f32.mrb[0].mxu0
  %v972 = vadd.f32 %v696, %v971
  %v973 = vpop.f32.mrb[0].mxu0
  %974 = vmatprep.mubr.f32.mxu0 0.0
  %v975 = vand.u32 %v97, 4294901760
  %v976 = vsub.f32 %v97, %v975
  %977 = vmatmul.mubr.f32.gmra.mrb[0].mxu0 %v976
  %v978 = vpop.f32.mrb[0].mxu0
  %v979 = vadd.f32 %v702, %v978
  %v980 = vpop.f32.mrb[0].mxu0
  %981 = vmatprep.mubr.f32.mxu0 0.0
  %v982 = vand.u32 %v100, 4294901760
  %v983 = vsub.f32 %v100, %v982
  %984 = vmatmul.mubr.f32.gmra.mrb[0].mxu0 %v983
  %v985 = vpop.f32.mrb[0].mxu0
  %v986 = vadd.f32 %v708, %v985
  %v987 = vpop.f32.mrb[0].mxu0
  %988 = vmatprep.mubr.f32.mxu0 0.0
  %v989 = vand.u32 %v103, 4294901760
  %v990 = vsub.f32 %v103, %v989
  %991 = vmatmul.mubr.f32.gmra.mrb[0].mxu0 %v990
  %v992 = vpop.f32.mrb[0].mxu0
  %v993 = vadd.f32 %v714, %v992
  %v994 = vpop.f32.mrb[0].mxu0
  %995 = vmatprep.mubr.f32.mxu0 0.0
  %v996 = vand.u32 %v106, 4294901760
  %v997 = vsub.f32 %v106, %v996
  %998 = vmatmul.mubr.f32.gmra.mrb[0].mxu0 %v997
  %v999 = vpop.f32.mrb[0].mxu0
  %v1000 = vadd.f32 %v720, %v999
  %v1001 = vpop.f32.mrb[0].mxu0
  %1002 = vmatprep.mubr.f32.mxu0 0.0
  %v1003 = vand.u32 %v109, 4294901760
  %v1004 = vsub.f32 %v109, %v1003
  %1005 = vmatmul.mubr.f32.gmra.mrb[0].mxu0 %v1004
  %v1006 = vpop.f32.mrb[0].mxu0
  %v1007 = vadd.f32 %v726, %v1006
  %v1008 = vpop.f32.mrb[0].mxu0
  %1009 = vmatprep.mubr.f32.mxu0 0.0
  %v1010 = vand.u32 %v112, 4294901760
  %v1011 = vsub.f32 %v112, %v1010
  %1012 = vmatmul.mubr.f32.gmra.mrb[0].mxu0 %v1011
  %v1013 = vpop.f32.mrb[0].mxu0
  %v1014 = vadd.f32 %v732, %v1013
  %v1015 = vpop.f32.mrb[0].mxu0
  %1016 = vmatprep.mubr.f32.mxu0 0.0
  %v1017 = vand.u32 %v115, 4294901760
  %v1018 = vsub.f32 %v115, %v1017
  %1019 = vmatmul.mubr.f32.gmra.mrb[0].mxu0 %v1018
  %v1020 = vpop.f32.mrb[0].mxu0
  %v1021 = vadd.f32 %v738, %v1020
  %v1022 = vpop.f32.mrb[0].mxu0
  %1023 = vmatprep.mubr.f32.mxu0 0.0
  %v1024 = vand.u32 %v118, 4294901760
  %v1025 = vsub.f32 %v118, %v1024
  %1026 = vmatmul.mubr.f32.gmra.mrb[0].mxu0 %v1025
  %v1027 = vpop.f32.mrb[0].mxu0
  %v1028 = vadd.f32 %v744, %v1027
  %v1029 = vpop.f32.mrb[0].mxu0
  %1030 = vmatprep.mubr.f32.mxu0 0.0
  %v1031 = vand.u32 %v121, 4294901760
  %v1032 = vsub.f32 %v121, %v1031
  %1033 = vmatmul.mubr.f32.gmra.mrb[0].mxu0 %v1032
  %v1034 = vpop.f32.mrb[0].mxu0
  %v1035 = vadd.f32 %v750, %v1034
  %v1036 = vpop.f32.mrb[0].mxu0
  %1037 = vmatprep.mubr.f32.mxu0 0.0
  %v1038 = vand.u32 %v124, 4294901760
  %v1039 = vsub.f32 %v124, %v1038
  %1040 = vmatmul.mubr.f32.gmra.mrb[0].mxu0 %v1039
  %v1041 = vpop.f32.mrb[0].mxu0
  %v1042 = vadd.f32 %v756, %v1041
  %v1043 = vpop.f32.mrb[0].mxu0
  %1044 = vmatprep.mubr.f32.mxu0 0.0
  %v1045 = vand.u32 %v127, 4294901760
  %v1046 = vsub.f32 %v127, %v1045
  %1047 = vmatmul.mubr.f32.gmra.mrb[0].mxu0 %v1046
  %v1048 = vpop.f32.mrb[0].mxu0
  %v1049 = vadd.f32 %v762, %v1048
  %v1050 = vpop.f32.mrb[0].mxu0
  %1051 = vmatprep.mubr.f32.mxu0 0.0
  %v1052 = vand.u32 %v130, 4294901760
  %v1053 = vsub.f32 %v130, %v1052
  %1054 = vmatmul.mubr.f32.gmra.mrb[0].mxu0 %v1053
  %v1055 = vpop.f32.mrb[0].mxu0
  %v1056 = vadd.f32 %v768, %v1055
  %v1057 = vpop.f32.mrb[0].mxu0
  %1058 = vmatprep.mubr.f32.mxu0 0.0
  %v1059 = vand.u32 %v133, 4294901760
  %v1060 = vsub.f32 %v133, %v1059
  %1061 = vmatmul.mubr.f32.gmra.mrb[0].mxu0 %v1060
  %v1062 = vpop.f32.mrb[0].mxu0
  %v1063 = vadd.f32 %v774, %v1062
  %v1064 = vpop.f32.mrb[0].mxu0
  %1065 = vmatprep.mubr.f32.mxu0 0.0
  %v1066 = vand.u32 %v136, 4294901760
  %v1067 = vsub.f32 %v136, %v1066
  %1068 = vmatmul.mubr.f32.gmra.mrb[0].mxu0 %v1067
  %v1069 = vpop.f32.mrb[0].mxu0
  %v1070 = vadd.f32 %v780, %v1069
  %v1071 = vpop.f32.mrb[0].mxu0
  %1072 = vmatprep.mubr.f32.mxu0 0.0
  %v1073 = vand.u32 %v139, 4294901760
  %v1074 = vsub.f32 %v139, %v1073
  %1075 = vmatmul.mubr.f32.gmra.mrb[0].mxu0 %v1074
  %v1076 = vpop.f32.mrb[0].mxu0
  %v1077 = vadd.f32 %v786, %v1076
  %v1078 = vpop.f32.mrb[0].mxu0
  %1079 = vdwg.mxu0
  %1080 = vmatprep.subr.mxu0 0.0
  %v1081 = vand.u32 %v43, 4294901760
  %1082 = vmatpush1.msra.mxu0 %v1081
  %1083 = vmatprep.subr.mxu0 0.0
  %1084 = vmatpush1.msra.mxu0 0.0
  %1085 = vmatprep.subr.mxu0 0.0
  %1086 = vmatpush1.msra.mxu0 0.0
  %1087 = vmatprep.subr.mxu0 0.0
  %1088 = vmatpush1.msra.mxu0 0.0
  %1089 = vmatprep.subr.mxu0 0.0
  %1090 = vmatpush1.msra.mxu0 0.0
  %1091 = vmatprep.subr.mxu0 0.0
  %1092 = vmatpush1.msra.mxu0 0.0
  %1093 = vmatprep.subr.mxu0 0.0
  %1094 = vmatpush1.msra.mxu0 0.0
  %1095 = vmatprep.subr.mxu0 0.0
  %1096 = vmatpush1.msra.mxu0 0.0
  %1097 = vmatprep.subr.mxu0 0.0
  %1098 = vmatpush1.msra.mxu0 0.0
  %1099 = vmatprep.subr.mxu0 0.0
  %1100 = vmatpush1.msra.mxu0 0.0
  %1101 = vmatprep.subr.mxu0 0.0
  %1102 = vmatpush1.msra.mxu0 0.0
  %1103 = vmatprep.subr.mxu0 0.0
  %1104 = vmatpush1.msra.mxu0 0.0
  %1105 = vmatprep.subr.mxu0 0.0
  %1106 = vmatpush1.msra.mxu0 0.0
  %1107 = vmatprep.subr.mxu0 0.0
  %1108 = vmatpush1.msra.mxu0 0.0
  %1109 = vmatprep.subr.mxu0 0.0
  %1110 = vmatpush1.msra.mxu0 0.0
  %1111 = vmatprep.subr.mxu0 0.0
  %1112 = vmatpush1.msra.mxu0 0.0
  %1113 = vmatprep.subr.mxu0 0.0
  %1114 = vmatpush1.msra.mxu0 0.0
  %1115 = vmatprep.subr.mxu0 0.0
  %1116 = vmatpush1.msra.mxu0 0.0
  %1117 = vmatprep.subr.mxu0 0.0
  %1118 = vmatpush1.msra.mxu0 0.0
  %1119 = vmatprep.subr.mxu0 0.0
  %1120 = vmatpush1.msra.mxu0 0.0
  %1121 = vmatprep.subr.mxu0 0.0
  %1122 = vmatpush1.msra.mxu0 0.0
  %1123 = vmatprep.subr.mxu0 0.0
  %1124 = vmatpush1.msra.mxu0 0.0
  %1125 = vmatprep.subr.mxu0 0.0
  %1126 = vmatpush1.msra.mxu0 0.0
  %1127 = vmatprep.subr.mxu0 0.0
  %1128 = vmatpush1.msra.mxu0 0.0
  %1129 = vmatprep.subr.mxu0 0.0
  %1130 = vmatpush1.msra.mxu0 0.0
  %1131 = vmatprep.subr.mxu0 0.0
  %1132 = vmatpush1.msra.mxu0 0.0
  %1133 = vmatprep.subr.mxu0 0.0
  %1134 = vmatpush1.msra.mxu0 0.0
  %1135 = vmatprep.subr.mxu0 0.0
  %1136 = vmatpush1.msra.mxu0 0.0
  %1137 = vmatprep.subr.mxu0 0.0
  %1138 = vmatpush1.msra.mxu0 0.0
  %1139 = vmatprep.subr.mxu0 0.0
  %1140 = vmatpush1.msra.mxu0 0.0
  %1141 = vmatprep.subr.mxu0 0.0
  %1142 = vmatpush1.msra.mxu0 0.0
  %1143 = vmatprep.subr.mxu0 0.0
  %1144 = vmatpush1.msra.mxu0 0.0
  %1145 = vmatprep.mubr.f32.mxu0 0.0
  %v1146 = vand.u32 %v46, 4294901760
  %v1147 = vsub.f32 %v46, %v1146
  %v1148 = vand.u32 %v1147, 4294901760
  %1149 = vmatmul.mubr.f32.gmra.mrb[0].mxu0 %v1148
  %v1150 = vpop.f32.mrb[0].mxu0
  %v1151 = vadd.f32 %v860, %v1150
  %v1152 = vpop.f32.mrb[0].mxu0
  %1153 = vmatprep.mubr.f32.mxu0 0.0
  %v1154 = vand.u32 %v49, 4294901760
  %v1155 = vsub.f32 %v49, %v1154
  %v1156 = vand.u32 %v1155, 4294901760
  %1157 = vmatmul.mubr.f32.gmra.mrb[0].mxu0 %v1156
  %v1158 = vpop.f32.mrb[0].mxu0
  %v1159 = vadd.f32 %v867, %v1158
  %v1160 = vpop.f32.mrb[0].mxu0
  %1161 = vmatprep.mubr.f32.mxu0 0.0
  %v1162 = vand.u32 %v52, 4294901760
  %v1163 = vsub.f32 %v52, %v1162
  %v1164 = vand.u32 %v1163, 4294901760
  %1165 = vmatmul.mubr.f32.gmra.mrb[0].mxu0 %v1164
  %v1166 = vpop.f32.mrb[0].mxu0
  %v1167 = vadd.f32 %v874, %v1166
  %v1168 = vpop.f32.mrb[0].mxu0
  %1169 = vmatprep.mubr.f32.mxu0 0.0
  %v1170 = vand.u32 %v55, 4294901760
  %v1171 = vsub.f32 %v55, %v1170
  %v1172 = vand.u32 %v1171, 4294901760
  %1173 = vmatmul.mubr.f32.gmra.mrb[0].mxu0 %v1172
  %v1174 = vpop.f32.mrb[0].mxu0
  %v1175 = vadd.f32 %v881, %v1174
  %v1176 = vpop.f32.mrb[0].mxu0
  %1177 = vmatprep.mubr.f32.mxu0 0.0
  %v1178 = vand.u32 %v58, 4294901760
  %v1179 = vsub.f32 %v58, %v1178
  %v1180 = vand.u32 %v1179, 4294901760
  %1181 = vmatmul.mubr.f32.gmra.mrb[0].mxu0 %v1180
  %v1182 = vpop.f32.mrb[0].mxu0
  %v1183 = vadd.f32 %v888, %v1182
  %v1184 = vpop.f32.mrb[0].mxu0
  %1185 = vmatprep.mubr.f32.mxu0 0.0
  %v1186 = vand.u32 %v61, 4294901760
  %v1187 = vsub.f32 %v61, %v1186
  %v1188 = vand.u32 %v1187, 4294901760
  %1189 = vmatmul.mubr.f32.gmra.mrb[0].mxu0 %v1188
  %v1190 = vpop.f32.mrb[0].mxu0
  %v1191 = vadd.f32 %v895, %v1190
  %v1192 = vpop.f32.mrb[0].mxu0
  %1193 = vmatprep.mubr.f32.mxu0 0.0
  %v1194 = vand.u32 %v64, 4294901760
  %v1195 = vsub.f32 %v64, %v1194
  %v1196 = vand.u32 %v1195, 4294901760
  %1197 = vmatmul.mubr.f32.gmra.mrb[0].mxu0 %v1196
  %v1198 = vpop.f32.mrb[0].mxu0
  %v1199 = vadd.f32 %v902, %v1198
  %v1200 = vpop.f32.mrb[0].mxu0
  %1201 = vmatprep.mubr.f32.mxu0 0.0
  %v1202 = vand.u32 %v67, 4294901760
  %v1203 = vsub.f32 %v67, %v1202
  %v1204 = vand.u32 %v1203, 4294901760
  %1205 = vmatmul.mubr.f32.gmra.mrb[0].mxu0 %v1204
  %v1206 = vpop.f32.mrb[0].mxu0
  %v1207 = vadd.f32 %v909, %v1206
  %v1208 = vpop.f32.mrb[0].mxu0
  %1209 = vmatprep.mubr.f32.mxu0 0.0
  %v1210 = vand.u32 %v70, 4294901760
  %v1211 = vsub.f32 %v70, %v1210
  %v1212 = vand.u32 %v1211, 4294901760
  %1213 = vmatmul.mubr.f32.gmra.mrb[0].mxu0 %v1212
  %v1214 = vpop.f32.mrb[0].mxu0
  %v1215 = vadd.f32 %v916, %v1214
  %v1216 = vpop.f32.mrb[0].mxu0
  %1217 = vmatprep.mubr.f32.mxu0 0.0
  %v1218 = vand.u32 %v73, 4294901760
  %v1219 = vsub.f32 %v73, %v1218
  %v1220 = vand.u32 %v1219, 4294901760
  %1221 = vmatmul.mubr.f32.gmra.mrb[0].mxu0 %v1220
  %v1222 = vpop.f32.mrb[0].mxu0
  %v1223 = vadd.f32 %v923, %v1222
  %v1224 = vpop.f32.mrb[0].mxu0
  %1225 = vmatprep.mubr.f32.mxu0 0.0
  %v1226 = vand.u32 %v76, 4294901760
  %v1227 = vsub.f32 %v76, %v1226
  %v1228 = vand.u32 %v1227, 4294901760
  %1229 = vmatmul.mubr.f32.gmra.mrb[0].mxu0 %v1228
  %v1230 = vpop.f32.mrb[0].mxu0
  %v1231 = vadd.f32 %v930, %v1230
  %v1232 = vpop.f32.mrb[0].mxu0
  %1233 = vmatprep.mubr.f32.mxu0 0.0
  %v1234 = vand.u32 %v79, 4294901760
  %v1235 = vsub.f32 %v79, %v1234
  %v1236 = vand.u32 %v1235, 4294901760
  %1237 = vmatmul.mubr.f32.gmra.mrb[0].mxu0 %v1236
  %v1238 = vpop.f32.mrb[0].mxu0
  %v1239 = vadd.f32 %v937, %v1238
  %v1240 = vpop.f32.mrb[0].mxu0
  %1241 = vmatprep.mubr.f32.mxu0 0.0
  %v1242 = vand.u32 %v82, 4294901760
  %v1243 = vsub.f32 %v82, %v1242
  %v1244 = vand.u32 %v1243, 4294901760
  %1245 = vmatmul.mubr.f32.gmra.mrb[0].mxu0 %v1244
  %v1246 = vpop.f32.mrb[0].mxu0
  %v1247 = vadd.f32 %v944, %v1246
  %v1248 = vpop.f32.mrb[0].mxu0
  %1249 = vmatprep.mubr.f32.mxu0 0.0
  %v1250 = vand.u32 %v85, 4294901760
  %v1251 = vsub.f32 %v85, %v1250
  %v1252 = vand.u32 %v1251, 4294901760
  %1253 = vmatmul.mubr.f32.gmra.mrb[0].mxu0 %v1252
  %v1254 = vpop.f32.mrb[0].mxu0
  %v1255 = vadd.f32 %v951, %v1254
  %v1256 = vpop.f32.mrb[0].mxu0
  %1257 = vmatprep.mubr.f32.mxu0 0.0
  %v1258 = vand.u32 %v88, 4294901760
  %v1259 = vsub.f32 %v88, %v1258
  %v1260 = vand.u32 %v1259, 4294901760
  %1261 = vmatmul.mubr.f32.gmra.mrb[0].mxu0 %v1260
  %v1262 = vpop.f32.mrb[0].mxu0
  %v1263 = vadd.f32 %v958, %v1262
  %v1264 = vpop.f32.mrb[0].mxu0
  %1265 = vmatprep.mubr.f32.mxu0 0.0
  %v1266 = vand.u32 %v91, 4294901760
  %v1267 = vsub.f32 %v91, %v1266
  %v1268 = vand.u32 %v1267, 4294901760
  %1269 = vmatmul.mubr.f32.gmra.mrb[0].mxu0 %v1268
  %v1270 = vpop.f32.mrb[0].mxu0
  %v1271 = vadd.f32 %v965, %v1270
  %v1272 = vpop.f32.mrb[0].mxu0
  %1273 = vmatprep.mubr.f32.mxu0 0.0
  %v1274 = vand.u32 %v94, 4294901760
  %v1275 = vsub.f32 %v94, %v1274
  %v1276 = vand.u32 %v1275, 4294901760
  %1277 = vmatmul.mubr.f32.gmra.mrb[0].mxu0 %v1276
  %v1278 = vpop.f32.mrb[0].mxu0
  %v1279 = vadd.f32 %v972, %v1278
  %v1280 = vpop.f32.mrb[0].mxu0
  %1281 = vmatprep.mubr.f32.mxu0 0.0
  %v1282 = vand.u32 %v97, 4294901760
  %v1283 = vsub.f32 %v97, %v1282
  %v1284 = vand.u32 %v1283, 4294901760
  %1285 = vmatmul.mubr.f32.gmra.mrb[0].mxu0 %v1284
  %v1286 = vpop.f32.mrb[0].mxu0
  %v1287 = vadd.f32 %v979, %v1286
  %v1288 = vpop.f32.mrb[0].mxu0
  %1289 = vmatprep.mubr.f32.mxu0 0.0
  %v1290 = vand.u32 %v100, 4294901760
  %v1291 = vsub.f32 %v100, %v1290
  %v1292 = vand.u32 %v1291, 4294901760
  %1293 = vmatmul.mubr.f32.gmra.mrb[0].mxu0 %v1292
  %v1294 = vpop.f32.mrb[0].mxu0
  %v1295 = vadd.f32 %v986, %v1294
  %v1296 = vpop.f32.mrb[0].mxu0
  %1297 = vmatprep.mubr.f32.mxu0 0.0
  %v1298 = vand.u32 %v103, 4294901760
  %v1299 = vsub.f32 %v103, %v1298
  %v1300 = vand.u32 %v1299, 4294901760
  %1301 = vmatmul.mubr.f32.gmra.mrb[0].mxu0 %v1300
  %v1302 = vpop.f32.mrb[0].mxu0
  %v1303 = vadd.f32 %v993, %v1302
  %v1304 = vpop.f32.mrb[0].mxu0
  %1305 = vmatprep.mubr.f32.mxu0 0.0
  %v1306 = vand.u32 %v106, 4294901760
  %v1307 = vsub.f32 %v106, %v1306
  %v1308 = vand.u32 %v1307, 4294901760
  %1309 = vmatmul.mubr.f32.gmra.mrb[0].mxu0 %v1308
  %v1310 = vpop.f32.mrb[0].mxu0
  %v1311 = vadd.f32 %v1000, %v1310
  %v1312 = vpop.f32.mrb[0].mxu0
  %1313 = vmatprep.mubr.f32.mxu0 0.0
  %v1314 = vand.u32 %v109, 4294901760
  %v1315 = vsub.f32 %v109, %v1314
  %v1316 = vand.u32 %v1315, 4294901760
  %1317 = vmatmul.mubr.f32.gmra.mrb[0].mxu0 %v1316
  %v1318 = vpop.f32.mrb[0].mxu0
  %v1319 = vadd.f32 %v1007, %v1318
  %v1320 = vpop.f32.mrb[0].mxu0
  %1321 = vmatprep.mubr.f32.mxu0 0.0
  %v1322 = vand.u32 %v112, 4294901760
  %v1323 = vsub.f32 %v112, %v1322
  %v1324 = vand.u32 %v1323, 4294901760
  %1325 = vmatmul.mubr.f32.gmra.mrb[0].mxu0 %v1324
  %v1326 = vpop.f32.mrb[0].mxu0
  %v1327 = vadd.f32 %v1014, %v1326
  %v1328 = vpop.f32.mrb[0].mxu0
  %1329 = vmatprep.mubr.f32.mxu0 0.0
  %v1330 = vand.u32 %v115, 4294901760
  %v1331 = vsub.f32 %v115, %v1330
  %v1332 = vand.u32 %v1331, 4294901760
  %1333 = vmatmul.mubr.f32.gmra.mrb[0].mxu0 %v1332
  %v1334 = vpop.f32.mrb[0].mxu0
  %v1335 = vadd.f32 %v1021, %v1334
  %v1336 = vpop.f32.mrb[0].mxu0
  %1337 = vmatprep.mubr.f32.mxu0 0.0
  %v1338 = vand.u32 %v118, 4294901760
  %v1339 = vsub.f32 %v118, %v1338
  %v1340 = vand.u32 %v1339, 4294901760
  %1341 = vmatmul.mubr.f32.gmra.mrb[0].mxu0 %v1340
  %v1342 = vpop.f32.mrb[0].mxu0
  %v1343 = vadd.f32 %v1028, %v1342
  %v1344 = vpop.f32.mrb[0].mxu0
  %1345 = vmatprep.mubr.f32.mxu0 0.0
  %v1346 = vand.u32 %v121, 4294901760
  %v1347 = vsub.f32 %v121, %v1346
  %v1348 = vand.u32 %v1347, 4294901760
  %1349 = vmatmul.mubr.f32.gmra.mrb[0].mxu0 %v1348
  %v1350 = vpop.f32.mrb[0].mxu0
  %v1351 = vadd.f32 %v1035, %v1350
  %v1352 = vpop.f32.mrb[0].mxu0
  %1353 = vmatprep.mubr.f32.mxu0 0.0
  %v1354 = vand.u32 %v124, 4294901760
  %v1355 = vsub.f32 %v124, %v1354
  %v1356 = vand.u32 %v1355, 4294901760
  %1357 = vmatmul.mubr.f32.gmra.mrb[0].mxu0 %v1356
  %v1358 = vpop.f32.mrb[0].mxu0
  %v1359 = vadd.f32 %v1042, %v1358
  %v1360 = vpop.f32.mrb[0].mxu0
  %1361 = vmatprep.mubr.f32.mxu0 0.0
  %v1362 = vand.u32 %v127, 4294901760
  %v1363 = vsub.f32 %v127, %v1362
  %v1364 = vand.u32 %v1363, 4294901760
  %1365 = vmatmul.mubr.f32.gmra.mrb[0].mxu0 %v1364
  %v1366 = vpop.f32.mrb[0].mxu0
  %v1367 = vadd.f32 %v1049, %v1366
  %v1368 = vpop.f32.mrb[0].mxu0
  %1369 = vmatprep.mubr.f32.mxu0 0.0
  %v1370 = vand.u32 %v130, 4294901760
  %v1371 = vsub.f32 %v130, %v1370
  %v1372 = vand.u32 %v1371, 4294901760
  %1373 = vmatmul.mubr.f32.gmra.mrb[0].mxu0 %v1372
  %v1374 = vpop.f32.mrb[0].mxu0
  %v1375 = vadd.f32 %v1056, %v1374
  %v1376 = vpop.f32.mrb[0].mxu0
  %1377 = vmatprep.mubr.f32.mxu0 0.0
  %v1378 = vand.u32 %v133, 4294901760
  %v1379 = vsub.f32 %v133, %v1378
  %v1380 = vand.u32 %v1379, 4294901760
  %1381 = vmatmul.mubr.f32.gmra.mrb[0].mxu0 %v1380
  %v1382 = vpop.f32.mrb[0].mxu0
  %v1383 = vadd.f32 %v1063, %v1382
  %v1384 = vpop.f32.mrb[0].mxu0
  %1385 = vmatprep.mubr.f32.mxu0 0.0
  %v1386 = vand.u32 %v136, 4294901760
  %v1387 = vsub.f32 %v136, %v1386
  %v1388 = vand.u32 %v1387, 4294901760
  %1389 = vmatmul.mubr.f32.gmra.mrb[0].mxu0 %v1388
  %v1390 = vpop.f32.mrb[0].mxu0
  %v1391 = vadd.f32 %v1070, %v1390
  %v1392 = vpop.f32.mrb[0].mxu0
  %1393 = vmatprep.mubr.f32.mxu0 0.0
  %v1394 = vand.u32 %v139, 4294901760
  %v1395 = vsub.f32 %v139, %v1394
  %v1396 = vand.u32 %v1395, 4294901760
  %1397 = vmatmul.mubr.f32.gmra.mrb[0].mxu0 %v1396
  %v1398 = vpop.f32.mrb[0].mxu0
  %v1399 = vadd.f32 %v1077, %v1398
  %v1400 = vpop.f32.mrb[0].mxu0
  %1401 = vdwg.mxu0
  %1402 = vmatprep.subr.mxu0 0.0
  %v1403 = vand.u32 %v43, 4294901760
  %v1404 = vsub.f32 %v43, %v1403
  %v1405 = vand.u32 %v1404, 4294901760
  %1406 = vmatpush1.msra.mxu0 %v1405
  %1407 = vmatprep.subr.mxu0 0.0
  %1408 = vmatpush1.msra.mxu0 0.0
  %1409 = vmatprep.subr.mxu0 0.0
  %1410 = vmatpush1.msra.mxu0 0.0
  %1411 = vmatprep.subr.mxu0 0.0
  %1412 = vmatpush1.msra.mxu0 0.0
  %1413 = vmatprep.subr.mxu0 0.0
  %1414 = vmatpush1.msra.mxu0 0.0
  %1415 = vmatprep.subr.mxu0 0.0
  %1416 = vmatpush1.msra.mxu0 0.0
  %1417 = vmatprep.subr.mxu0 0.0
  %1418 = vmatpush1.msra.mxu0 0.0
  %1419 = vmatprep.subr.mxu0 0.0
  %1420 = vmatpush1.msra.mxu0 0.0
  %1421 = vmatprep.subr.mxu0 0.0
  %1422 = vmatpush1.msra.mxu0 0.0
  %1423 = vmatprep.subr.mxu0 0.0
  %1424 = vmatpush1.msra.mxu0 0.0
  %1425 = vmatprep.subr.mxu0 0.0
  %1426 = vmatpush1.msra.mxu0 0.0
  %1427 = vmatprep.subr.mxu0 0.0
  %1428 = vmatpush1.msra.mxu0 0.0
  %1429 = vmatprep.subr.mxu0 0.0
  %1430 = vmatpush1.msra.mxu0 0.0
  %1431 = vmatprep.subr.mxu0 0.0
  %1432 = vmatpush1.msra.mxu0 0.0
  %1433 = vmatprep.subr.mxu0 0.0
  %1434 = vmatpush1.msra.mxu0 0.0
  %1435 = vmatprep.subr.mxu0 0.0
  %1436 = vmatpush1.msra.mxu0 0.0
  %1437 = vmatprep.subr.mxu0 0.0
  %1438 = vmatpush1.msra.mxu0 0.0
  %1439 = vmatprep.subr.mxu0 0.0
  %1440 = vmatpush1.msra.mxu0 0.0
  %1441 = vmatprep.subr.mxu0 0.0
  %1442 = vmatpush1.msra.mxu0 0.0
  %1443 = vmatprep.subr.mxu0 0.0
  %1444 = vmatpush1.msra.mxu0 0.0
  %1445 = vmatprep.subr.mxu0 0.0
  %1446 = vmatpush1.msra.mxu0 0.0
  %1447 = vmatprep.subr.mxu0 0.0
  %1448 = vmatpush1.msra.mxu0 0.0
  %1449 = vmatprep.subr.mxu0 0.0
  %1450 = vmatpush1.msra.mxu0 0.0
  %1451 = vmatprep.subr.mxu0 0.0
  %1452 = vmatpush1.msra.mxu0 0.0
  %1453 = vmatprep.subr.mxu0 0.0
  %1454 = vmatpush1.msra.mxu0 0.0
  %1455 = vmatprep.subr.mxu0 0.0
  %1456 = vmatpush1.msra.mxu0 0.0
  %1457 = vmatprep.subr.mxu0 0.0
  %1458 = vmatpush1.msra.mxu0 0.0
  %1459 = vmatprep.subr.mxu0 0.0
  %1460 = vmatpush1.msra.mxu0 0.0
  %1461 = vmatprep.subr.mxu0 0.0
  %1462 = vmatpush1.msra.mxu0 0.0
  %1463 = vmatprep.subr.mxu0 0.0
  %1464 = vmatpush1.msra.mxu0 0.0
  %1465 = vmatprep.subr.mxu0 0.0
  %1466 = vmatpush1.msra.mxu0 0.0
  %1467 = vmatprep.subr.mxu0 0.0
  %1468 = vmatpush1.msra.mxu0 0.0
  %1469 = vmatprep.mubr.f32.mxu0 0.0
  %v1470 = vand.u32 %v46, 4294901760
  %1471 = vmatmul.mubr.f32.gmra.mrb[0].mxu0 %v1470
  %v1472 = vpop.f32.mrb[0].mxu0
  %v1473 = vadd.f32 %v1151, %v1472
  %v1474 = vpop.f32.mrb[0].mxu0
  %1475 = vmatprep.mubr.f32.mxu0 0.0
  %v1476 = vand.u32 %v49, 4294901760
  %1477 = vmatmul.mubr.f32.gmra.mrb[0].mxu0 %v1476
  %v1478 = vpop.f32.mrb[0].mxu0
  %v1479 = vadd.f32 %v1159, %v1478
  %v1480 = vpop.f32.mrb[0].mxu0
  %1481 = vmatprep.mubr.f32.mxu0 0.0
  %v1482 = vand.u32 %v52, 4294901760
  %1483 = vmatmul.mubr.f32.gmra.mrb[0].mxu0 %v1482
  %v1484 = vpop.f32.mrb[0].mxu0
  %v1485 = vadd.f32 %v1167, %v1484
  %v1486 = vpop.f32.mrb[0].mxu0
  %1487 = vmatprep.mubr.f32.mxu0 0.0
  %v1488 = vand.u32 %v55, 4294901760
  %1489 = vmatmul.mubr.f32.gmra.mrb[0].mxu0 %v1488
  %v1490 = vpop.f32.mrb[0].mxu0
  %v1491 = vadd.f32 %v1175, %v1490
  %v1492 = vpop.f32.mrb[0].mxu0
  %1493 = vmatprep.mubr.f32.mxu0 0.0
  %v1494 = vand.u32 %v58, 4294901760
  %1495 = vmatmul.mubr.f32.gmra.mrb[0].mxu0 %v1494
  %v1496 = vpop.f32.mrb[0].mxu0
  %v1497 = vadd.f32 %v1183, %v1496
  %v1498 = vpop.f32.mrb[0].mxu0
  %1499 = vmatprep.mubr.f32.mxu0 0.0
  %v1500 = vand.u32 %v61, 4294901760
  %1501 = vmatmul.mubr.f32.gmra.mrb[0].mxu0 %v1500
  %v1502 = vpop.f32.mrb[0].mxu0
  %v1503 = vadd.f32 %v1191, %v1502
  %v1504 = vpop.f32.mrb[0].mxu0
  %1505 = vmatprep.mubr.f32.mxu0 0.0
  %v1506 = vand.u32 %v64, 4294901760
  %1507 = vmatmul.mubr.f32.gmra.mrb[0].mxu0 %v1506
  %v1508 = vpop.f32.mrb[0].mxu0
  %v1509 = vadd.f32 %v1199, %v1508
  %v1510 = vpop.f32.mrb[0].mxu0
  %1511 = vmatprep.mubr.f32.mxu0 0.0
  %v1512 = vand.u32 %v67, 4294901760
  %1513 = vmatmul.mubr.f32.gmra.mrb[0].mxu0 %v1512
  %v1514 = vpop.f32.mrb[0].mxu0
  %v1515 = vadd.f32 %v1207, %v1514
  %v1516 = vpop.f32.mrb[0].mxu0
  %1517 = vmatprep.mubr.f32.mxu0 0.0
  %v1518 = vand.u32 %v70, 4294901760
  %1519 = vmatmul.mubr.f32.gmra.mrb[0].mxu0 %v1518
  %v1520 = vpop.f32.mrb[0].mxu0
  %v1521 = vadd.f32 %v1215, %v1520
  %v1522 = vpop.f32.mrb[0].mxu0
  %1523 = vmatprep.mubr.f32.mxu0 0.0
  %v1524 = vand.u32 %v73, 4294901760
  %1525 = vmatmul.mubr.f32.gmra.mrb[0].mxu0 %v1524
  %v1526 = vpop.f32.mrb[0].mxu0
  %v1527 = vadd.f32 %v1223, %v1526
  %v1528 = vpop.f32.mrb[0].mxu0
  %1529 = vmatprep.mubr.f32.mxu0 0.0
  %v1530 = vand.u32 %v76, 4294901760
  %1531 = vmatmul.mubr.f32.gmra.mrb[0].mxu0 %v1530
  %v1532 = vpop.f32.mrb[0].mxu0
  %v1533 = vadd.f32 %v1231, %v1532
  %v1534 = vpop.f32.mrb[0].mxu0
  %1535 = vmatprep.mubr.f32.mxu0 0.0
  %v1536 = vand.u32 %v79, 4294901760
  %1537 = vmatmul.mubr.f32.gmra.mrb[0].mxu0 %v1536
  %v1538 = vpop.f32.mrb[0].mxu0
  %v1539 = vadd.f32 %v1239, %v1538
  %v1540 = vpop.f32.mrb[0].mxu0
  %1541 = vmatprep.mubr.f32.mxu0 0.0
  %v1542 = vand.u32 %v82, 4294901760
  %1543 = vmatmul.mubr.f32.gmra.mrb[0].mxu0 %v1542
  %v1544 = vpop.f32.mrb[0].mxu0
  %v1545 = vadd.f32 %v1247, %v1544
  %v1546 = vpop.f32.mrb[0].mxu0
  %1547 = vmatprep.mubr.f32.mxu0 0.0
  %v1548 = vand.u32 %v85, 4294901760
  %1549 = vmatmul.mubr.f32.gmra.mrb[0].mxu0 %v1548
  %v1550 = vpop.f32.mrb[0].mxu0
  %v1551 = vadd.f32 %v1255, %v1550
  %v1552 = vpop.f32.mrb[0].mxu0
  %1553 = vmatprep.mubr.f32.mxu0 0.0
  %v1554 = vand.u32 %v88, 4294901760
  %1555 = vmatmul.mubr.f32.gmra.mrb[0].mxu0 %v1554
  %v1556 = vpop.f32.mrb[0].mxu0
  %v1557 = vadd.f32 %v1263, %v1556
  %v1558 = vpop.f32.mrb[0].mxu0
  %1559 = vmatprep.mubr.f32.mxu0 0.0
  %v1560 = vand.u32 %v91, 4294901760
  %1561 = vmatmul.mubr.f32.gmra.mrb[0].mxu0 %v1560
  %v1562 = vpop.f32.mrb[0].mxu0
  %v1563 = vadd.f32 %v1271, %v1562
  %v1564 = vpop.f32.mrb[0].mxu0
  %1565 = vmatprep.mubr.f32.mxu0 0.0
  %v1566 = vand.u32 %v94, 4294901760
  %1567 = vmatmul.mubr.f32.gmra.mrb[0].mxu0 %v1566
  %v1568 = vpop.f32.mrb[0].mxu0
  %v1569 = vadd.f32 %v1279, %v1568
  %v1570 = vpop.f32.mrb[0].mxu0
  %1571 = vmatprep.mubr.f32.mxu0 0.0
  %v1572 = vand.u32 %v97, 4294901760
  %1573 = vmatmul.mubr.f32.gmra.mrb[0].mxu0 %v1572
  %v1574 = vpop.f32.mrb[0].mxu0
  %v1575 = vadd.f32 %v1287, %v1574
  %v1576 = vpop.f32.mrb[0].mxu0
  %1577 = vmatprep.mubr.f32.mxu0 0.0
  %v1578 = vand.u32 %v100, 4294901760
  %1579 = vmatmul.mubr.f32.gmra.mrb[0].mxu0 %v1578
  %v1580 = vpop.f32.mrb[0].mxu0
  %v1581 = vadd.f32 %v1295, %v1580
  %v1582 = vpop.f32.mrb[0].mxu0
  %1583 = vmatprep.mubr.f32.mxu0 0.0
  %v1584 = vand.u32 %v103, 4294901760
  %1585 = vmatmul.mubr.f32.gmra.mrb[0].mxu0 %v1584
  %v1586 = vpop.f32.mrb[0].mxu0
  %v1587 = vadd.f32 %v1303, %v1586
  %v1588 = vpop.f32.mrb[0].mxu0
  %1589 = vmatprep.mubr.f32.mxu0 0.0
  %v1590 = vand.u32 %v106, 4294901760
  %1591 = vmatmul.mubr.f32.gmra.mrb[0].mxu0 %v1590
  %v1592 = vpop.f32.mrb[0].mxu0
  %v1593 = vadd.f32 %v1311, %v1592
  %v1594 = vpop.f32.mrb[0].mxu0
  %1595 = vmatprep.mubr.f32.mxu0 0.0
  %v1596 = vand.u32 %v109, 4294901760
  %1597 = vmatmul.mubr.f32.gmra.mrb[0].mxu0 %v1596
  %v1598 = vpop.f32.mrb[0].mxu0
  %v1599 = vadd.f32 %v1319, %v1598
  %v1600 = vpop.f32.mrb[0].mxu0
  %1601 = vmatprep.mubr.f32.mxu0 0.0
  %v1602 = vand.u32 %v112, 4294901760
  %1603 = vmatmul.mubr.f32.gmra.mrb[0].mxu0 %v1602
  %v1604 = vpop.f32.mrb[0].mxu0
  %v1605 = vadd.f32 %v1327, %v1604
  %v1606 = vpop.f32.mrb[0].mxu0
  %1607 = vmatprep.mubr.f32.mxu0 0.0
  %v1608 = vand.u32 %v115, 4294901760
  %1609 = vmatmul.mubr.f32.gmra.mrb[0].mxu0 %v1608
  %v1610 = vpop.f32.mrb[0].mxu0
  %v1611 = vadd.f32 %v1335, %v1610
  %v1612 = vpop.f32.mrb[0].mxu0
  %1613 = vmatprep.mubr.f32.mxu0 0.0
  %v1614 = vand.u32 %v118, 4294901760
  %1615 = vmatmul.mubr.f32.gmra.mrb[0].mxu0 %v1614
  %v1616 = vpop.f32.mrb[0].mxu0
  %v1617 = vadd.f32 %v1343, %v1616
  %v1618 = vpop.f32.mrb[0].mxu0
  %1619 = vmatprep.mubr.f32.mxu0 0.0
  %v1620 = vand.u32 %v121, 4294901760
  %1621 = vmatmul.mubr.f32.gmra.mrb[0].mxu0 %v1620
  %v1622 = vpop.f32.mrb[0].mxu0
  %v1623 = vadd.f32 %v1351, %v1622
  %v1624 = vpop.f32.mrb[0].mxu0
  %1625 = vmatprep.mubr.f32.mxu0 0.0
  %v1626 = vand.u32 %v124, 4294901760
  %1627 = vmatmul.mubr.f32.gmra.mrb[0].mxu0 %v1626
  %v1628 = vpop.f32.mrb[0].mxu0
  %v1629 = vadd.f32 %v1359, %v1628
  %v1630 = vpop.f32.mrb[0].mxu0
  %1631 = vmatprep.mubr.f32.mxu0 0.0
  %v1632 = vand.u32 %v127, 4294901760
  %1633 = vmatmul.mubr.f32.gmra.mrb[0].mxu0 %v1632
  %v1634 = vpop.f32.mrb[0].mxu0
  %v1635 = vadd.f32 %v1367, %v1634
  %v1636 = vpop.f32.mrb[0].mxu0
  %1637 = vmatprep.mubr.f32.mxu0 0.0
  %v1638 = vand.u32 %v130, 4294901760
  %1639 = vmatmul.mubr.f32.gmra.mrb[0].mxu0 %v1638
  %v1640 = vpop.f32.mrb[0].mxu0
  %v1641 = vadd.f32 %v1375, %v1640
  %v1642 = vpop.f32.mrb[0].mxu0
  %1643 = vmatprep.mubr.f32.mxu0 0.0
  %v1644 = vand.u32 %v133, 4294901760
  %1645 = vmatmul.mubr.f32.gmra.mrb[0].mxu0 %v1644
  %v1646 = vpop.f32.mrb[0].mxu0
  %v1647 = vadd.f32 %v1383, %v1646
  %v1648 = vpop.f32.mrb[0].mxu0
  %1649 = vmatprep.mubr.f32.mxu0 0.0
  %v1650 = vand.u32 %v136, 4294901760
  %1651 = vmatmul.mubr.f32.gmra.mrb[0].mxu0 %v1650
  %v1652 = vpop.f32.mrb[0].mxu0
  %v1653 = vadd.f32 %v1391, %v1652
  %v1654 = vpop.f32.mrb[0].mxu0
  %1655 = vmatprep.mubr.f32.mxu0 0.0
  %v1656 = vand.u32 %v139, 4294901760
  %1657 = vmatmul.mubr.f32.gmra.mrb[0].mxu0 %v1656
  %v1658 = vpop.f32.mrb[0].mxu0
  %v1659 = vadd.f32 %v1399, %v1658
  %v1660 = vpop.f32.mrb[0].mxu0
  %1661 = vdwg.mxu0
  %1662 = vmatprep.subr.mxu0 0.0
  %v1663 = vand.u32 %v43, 4294901760
  %1664 = vmatpush1.msra.mxu0 %v1663
  %1665 = vmatprep.subr.mxu0 0.0
  %1666 = vmatpush1.msra.mxu0 0.0
  %1667 = vmatprep.subr.mxu0 0.0
  %1668 = vmatpush1.msra.mxu0 0.0
  %1669 = vmatprep.subr.mxu0 0.0
  %1670 = vmatpush1.msra.mxu0 0.0
  %1671 = vmatprep.subr.mxu0 0.0
  %1672 = vmatpush1.msra.mxu0 0.0
  %1673 = vmatprep.subr.mxu0 0.0
  %1674 = vmatpush1.msra.mxu0 0.0
  %1675 = vmatprep.subr.mxu0 0.0
  %1676 = vmatpush1.msra.mxu0 0.0
  %1677 = vmatprep.subr.mxu0 0.0
  %1678 = vmatpush1.msra.mxu0 0.0
  %1679 = vmatprep.subr.mxu0 0.0
  %1680 = vmatpush1.msra.mxu0 0.0
  %1681 = vmatprep.subr.mxu0 0.0
  %1682 = vmatpush1.msra.mxu0 0.0
  %1683 = vmatprep.subr.mxu0 0.0
  %1684 = vmatpush1.msra.mxu0 0.0
  %1685 = vmatprep.subr.mxu0 0.0
  %1686 = vmatpush1.msra.mxu0 0.0
  %1687 = vmatprep.subr.mxu0 0.0
  %1688 = vmatpush1.msra.mxu0 0.0
  %1689 = vmatprep.subr.mxu0 0.0
  %1690 = vmatpush1.msra.mxu0 0.0
  %1691 = vmatprep.subr.mxu0 0.0
  %1692 = vmatpush1.msra.mxu0 0.0
  %1693 = vmatprep.subr.mxu0 0.0
  %1694 = vmatpush1.msra.mxu0 0.0
  %1695 = vmatprep.subr.mxu0 0.0
  %1696 = vmatpush1.msra.mxu0 0.0
  %1697 = vmatprep.subr.mxu0 0.0
  %1698 = vmatpush1.msra.mxu0 0.0
  %1699 = vmatprep.subr.mxu0 0.0
  %1700 = vmatpush1.msra.mxu0 0.0
  %1701 = vmatprep.subr.mxu0 0.0
  %1702 = vmatpush1.msra.mxu0 0.0
  %1703 = vmatprep.subr.mxu0 0.0
  %1704 = vmatpush1.msra.mxu0 0.0
  %1705 = vmatprep.subr.mxu0 0.0
  %1706 = vmatpush1.msra.mxu0 0.0
  %1707 = vmatprep.subr.mxu0 0.0
  %1708 = vmatpush1.msra.mxu0 0.0
  %1709 = vmatprep.subr.mxu0 0.0
  %1710 = vmatpush1.msra.mxu0 0.0
  %1711 = vmatprep.subr.mxu0 0.0
  %1712 = vmatpush1.msra.mxu0 0.0
  %1713 = vmatprep.subr.mxu0 0.0
  %1714 = vmatpush1.msra.mxu0 0.0
  %1715 = vmatprep.subr.mxu0 0.0
  %1716 = vmatpush1.msra.mxu0 0.0
  %1717 = vmatprep.subr.mxu0 0.0
  %1718 = vmatpush1.msra.mxu0 0.0
  %1719 = vmatprep.subr.mxu0 0.0
  %1720 = vmatpush1.msra.mxu0 0.0
  %1721 = vmatprep.subr.mxu0 0.0
  %1722 = vmatpush1.msra.mxu0 0.0
  %1723 = vmatprep.subr.mxu0 0.0
  %1724 = vmatpush1.msra.mxu0 0.0
  %1725 = vmatprep.subr.mxu0 0.0
  %1726 = vmatpush1.msra.mxu0 0.0
  %1727 = vmatprep.mubr.f32.mxu0 0.0
  %v1728 = vand.u32 %v46, 4294901760
  %1729 = vmatmul.mubr.f32.gmra.mrb[0].mxu0 %v1728
  %v1730 = vpop.f32.mrb[0].mxu0
  %v1731 = vadd.f32 %v1473, %v1730
  %v1732 = vpop.f32.mrb[0].mxu0
  %1733 = vmatprep.mubr.f32.mxu0 0.0
  %v1734 = vand.u32 %v49, 4294901760
  %1735 = vmatmul.mubr.f32.gmra.mrb[0].mxu0 %v1734
  %v1736 = vpop.f32.mrb[0].mxu0
  %v1737 = vadd.f32 %v1479, %v1736
  %v1738 = vpop.f32.mrb[0].mxu0
  %1739 = vmatprep.mubr.f32.mxu0 0.0
  %v1740 = vand.u32 %v52, 4294901760
  %1741 = vmatmul.mubr.f32.gmra.mrb[0].mxu0 %v1740
  %v1742 = vpop.f32.mrb[0].mxu0
  %v1743 = vadd.f32 %v1485, %v1742
  %v1744 = vpop.f32.mrb[0].mxu0
  %1745 = vmatprep.mubr.f32.mxu0 0.0
  %v1746 = vand.u32 %v55, 4294901760
  %1747 = vmatmul.mubr.f32.gmra.mrb[0].mxu0 %v1746
  %v1748 = vpop.f32.mrb[0].mxu0
  %v1749 = vadd.f32 %v1491, %v1748
  %v1750 = vpop.f32.mrb[0].mxu0
  %1751 = vmatprep.mubr.f32.mxu0 0.0
  %v1752 = vand.u32 %v58, 4294901760
  %1753 = vmatmul.mubr.f32.gmra.mrb[0].mxu0 %v1752
  %v1754 = vpop.f32.mrb[0].mxu0
  %v1755 = vadd.f32 %v1497, %v1754
  %v1756 = vpop.f32.mrb[0].mxu0
  %1757 = vmatprep.mubr.f32.mxu0 0.0
  %v1758 = vand.u32 %v61, 4294901760
  %1759 = vmatmul.mubr.f32.gmra.mrb[0].mxu0 %v1758
  %v1760 = vpop.f32.mrb[0].mxu0
  %v1761 = vadd.f32 %v1503, %v1760
  %v1762 = vpop.f32.mrb[0].mxu0
  %1763 = vmatprep.mubr.f32.mxu0 0.0
  %v1764 = vand.u32 %v64, 4294901760
  %1765 = vmatmul.mubr.f32.gmra.mrb[0].mxu0 %v1764
  %v1766 = vpop.f32.mrb[0].mxu0
  %v1767 = vadd.f32 %v1509, %v1766
  %v1768 = vpop.f32.mrb[0].mxu0
  %1769 = vmatprep.mubr.f32.mxu0 0.0
  %v1770 = vand.u32 %v67, 4294901760
  %1771 = vmatmul.mubr.f32.gmra.mrb[0].mxu0 %v1770
  %v1772 = vpop.f32.mrb[0].mxu0
  %v1773 = vadd.f32 %v1515, %v1772
  %v1774 = vpop.f32.mrb[0].mxu0
  %1775 = vmatprep.mubr.f32.mxu0 0.0
  %v1776 = vand.u32 %v70, 4294901760
  %1777 = vmatmul.mubr.f32.gmra.mrb[0].mxu0 %v1776
  %v1778 = vpop.f32.mrb[0].mxu0
  %v1779 = vadd.f32 %v1521, %v1778
  %v1780 = vpop.f32.mrb[0].mxu0
  %1781 = vmatprep.mubr.f32.mxu0 0.0
  %v1782 = vand.u32 %v73, 4294901760
  %1783 = vmatmul.mubr.f32.gmra.mrb[0].mxu0 %v1782
  %v1784 = vpop.f32.mrb[0].mxu0
  %v1785 = vadd.f32 %v1527, %v1784
  %v1786 = vpop.f32.mrb[0].mxu0
  %1787 = vmatprep.mubr.f32.mxu0 0.0
  %v1788 = vand.u32 %v76, 4294901760
  %1789 = vmatmul.mubr.f32.gmra.mrb[0].mxu0 %v1788
  %v1790 = vpop.f32.mrb[0].mxu0
  %v1791 = vadd.f32 %v1533, %v1790
  %v1792 = vpop.f32.mrb[0].mxu0
  %1793 = vmatprep.mubr.f32.mxu0 0.0
  %v1794 = vand.u32 %v79, 4294901760
  %1795 = vmatmul.mubr.f32.gmra.mrb[0].mxu0 %v1794
  %v1796 = vpop.f32.mrb[0].mxu0
  %v1797 = vadd.f32 %v1539, %v1796
  %v1798 = vpop.f32.mrb[0].mxu0
  %1799 = vmatprep.mubr.f32.mxu0 0.0
  %v1800 = vand.u32 %v82, 4294901760
  %1801 = vmatmul.mubr.f32.gmra.mrb[0].mxu0 %v1800
  %v1802 = vpop.f32.mrb[0].mxu0
  %v1803 = vadd.f32 %v1545, %v1802
  %v1804 = vpop.f32.mrb[0].mxu0
  %1805 = vmatprep.mubr.f32.mxu0 0.0
  %v1806 = vand.u32 %v85, 4294901760
  %1807 = vmatmul.mubr.f32.gmra.mrb[0].mxu0 %v1806
  %v1808 = vpop.f32.mrb[0].mxu0
  %v1809 = vadd.f32 %v1551, %v1808
  %v1810 = vpop.f32.mrb[0].mxu0
  %1811 = vmatprep.mubr.f32.mxu0 0.0
  %v1812 = vand.u32 %v88, 4294901760
  %1813 = vmatmul.mubr.f32.gmra.mrb[0].mxu0 %v1812
  %v1814 = vpop.f32.mrb[0].mxu0
  %v1815 = vadd.f32 %v1557, %v1814
  %v1816 = vpop.f32.mrb[0].mxu0
  %1817 = vmatprep.mubr.f32.mxu0 0.0
  %v1818 = vand.u32 %v91, 4294901760
  %1819 = vmatmul.mubr.f32.gmra.mrb[0].mxu0 %v1818
  %v1820 = vpop.f32.mrb[0].mxu0
  %v1821 = vadd.f32 %v1563, %v1820
  %v1822 = vpop.f32.mrb[0].mxu0
  %1823 = vmatprep.mubr.f32.mxu0 0.0
  %v1824 = vand.u32 %v94, 4294901760
  %1825 = vmatmul.mubr.f32.gmra.mrb[0].mxu0 %v1824
  %v1826 = vpop.f32.mrb[0].mxu0
  %v1827 = vadd.f32 %v1569, %v1826
  %v1828 = vpop.f32.mrb[0].mxu0
  %1829 = vmatprep.mubr.f32.mxu0 0.0
  %v1830 = vand.u32 %v97, 4294901760
  %1831 = vmatmul.mubr.f32.gmra.mrb[0].mxu0 %v1830
  %v1832 = vpop.f32.mrb[0].mxu0
  %v1833 = vadd.f32 %v1575, %v1832
  %v1834 = vpop.f32.mrb[0].mxu0
  %1835 = vmatprep.mubr.f32.mxu0 0.0
  %v1836 = vand.u32 %v100, 4294901760
  %1837 = vmatmul.mubr.f32.gmra.mrb[0].mxu0 %v1836
  %v1838 = vpop.f32.mrb[0].mxu0
  %v1839 = vadd.f32 %v1581, %v1838
  %v1840 = vpop.f32.mrb[0].mxu0
  %1841 = vmatprep.mubr.f32.mxu0 0.0
  %v1842 = vand.u32 %v103, 4294901760
  %1843 = vmatmul.mubr.f32.gmra.mrb[0].mxu0 %v1842
  %v1844 = vpop.f32.mrb[0].mxu0
  %v1845 = vadd.f32 %v1587, %v1844
  %v1846 = vpop.f32.mrb[0].mxu0
  %1847 = vmatprep.mubr.f32.mxu0 0.0
  %v1848 = vand.u32 %v106, 4294901760
  %1849 = vmatmul.mubr.f32.gmra.mrb[0].mxu0 %v1848
  %v1850 = vpop.f32.mrb[0].mxu0
  %v1851 = vadd.f32 %v1593, %v1850
  %v1852 = vpop.f32.mrb[0].mxu0
  %1853 = vmatprep.mubr.f32.mxu0 0.0
  %v1854 = vand.u32 %v109, 4294901760
  %1855 = vmatmul.mubr.f32.gmra.mrb[0].mxu0 %v1854
  %v1856 = vpop.f32.mrb[0].mxu0
  %v1857 = vadd.f32 %v1599, %v1856
  %v1858 = vpop.f32.mrb[0].mxu0
  %1859 = vmatprep.mubr.f32.mxu0 0.0
  %v1860 = vand.u32 %v112, 4294901760
  %1861 = vmatmul.mubr.f32.gmra.mrb[0].mxu0 %v1860
  %v1862 = vpop.f32.mrb[0].mxu0
  %v1863 = vadd.f32 %v1605, %v1862
  %v1864 = vpop.f32.mrb[0].mxu0
  %1865 = vmatprep.mubr.f32.mxu0 0.0
  %v1866 = vand.u32 %v115, 4294901760
  %1867 = vmatmul.mubr.f32.gmra.mrb[0].mxu0 %v1866
  %v1868 = vpop.f32.mrb[0].mxu0
  %v1869 = vadd.f32 %v1611, %v1868
  %v1870 = vpop.f32.mrb[0].mxu0
  %1871 = vmatprep.mubr.f32.mxu0 0.0
  %v1872 = vand.u32 %v118, 4294901760
  %1873 = vmatmul.mubr.f32.gmra.mrb[0].mxu0 %v1872
  %v1874 = vpop.f32.mrb[0].mxu0
  %v1875 = vadd.f32 %v1617, %v1874
  %v1876 = vpop.f32.mrb[0].mxu0
  %1877 = vmatprep.mubr.f32.mxu0 0.0
  %v1878 = vand.u32 %v121, 4294901760
  %1879 = vmatmul.mubr.f32.gmra.mrb[0].mxu0 %v1878
  %v1880 = vpop.f32.mrb[0].mxu0
  %v1881 = vadd.f32 %v1623, %v1880
  %v1882 = vpop.f32.mrb[0].mxu0
  %1883 = vmatprep.mubr.f32.mxu0 0.0
  %v1884 = vand.u32 %v124, 4294901760
  %1885 = vmatmul.mubr.f32.gmra.mrb[0].mxu0 %v1884
  %v1886 = vpop.f32.mrb[0].mxu0
  %v1887 = vadd.f32 %v1629, %v1886
  %v1888 = vpop.f32.mrb[0].mxu0
  %1889 = vmatprep.mubr.f32.mxu0 0.0
  %v1890 = vand.u32 %v127, 4294901760
  %1891 = vmatmul.mubr.f32.gmra.mrb[0].mxu0 %v1890
  %v1892 = vpop.f32.mrb[0].mxu0
  %v1893 = vadd.f32 %v1635, %v1892
  %v1894 = vpop.f32.mrb[0].mxu0
  %1895 = vmatprep.mubr.f32.mxu0 0.0
  %v1896 = vand.u32 %v130, 4294901760
  %1897 = vmatmul.mubr.f32.gmra.mrb[0].mxu0 %v1896
  %v1898 = vpop.f32.mrb[0].mxu0
  %v1899 = vadd.f32 %v1641, %v1898
  %v1900 = vpop.f32.mrb[0].mxu0
  %1901 = vmatprep.mubr.f32.mxu0 0.0
  %v1902 = vand.u32 %v133, 4294901760
  %1903 = vmatmul.mubr.f32.gmra.mrb[0].mxu0 %v1902
  %v1904 = vpop.f32.mrb[0].mxu0
  %v1905 = vadd.f32 %v1647, %v1904
  %v1906 = vpop.f32.mrb[0].mxu0
  %1907 = vmatprep.mubr.f32.mxu0 0.0
  %v1908 = vand.u32 %v136, 4294901760
  %1909 = vmatmul.mubr.f32.gmra.mrb[0].mxu0 %v1908
  %v1910 = vpop.f32.mrb[0].mxu0
  %v1911 = vadd.f32 %v1653, %v1910
  %v1912 = vpop.f32.mrb[0].mxu0
  %1913 = vmatprep.mubr.f32.mxu0 0.0
  %v1914 = vand.u32 %v139, 4294901760
  %1915 = vmatmul.mubr.f32.gmra.mrb[0].mxu0 %v1914
  %v1916 = vpop.f32.mrb[0].mxu0
  %v1917 = vadd.f32 %v1659, %v1916
  %v1918 = vpop.f32.mrb[0].mxu0
  %1919 = vdwg.mxu0
  %vm1920 = vcmask 261120
  %1921 = vst.msk [vmem:[%s2] sm:$0xff] %vm1920, %v1731
  %1922 = vst.msk [vmem:[%s2 + $0x8] sm:$0xff] %vm1920, %v1737
  %1923 = vst.msk [vmem:[%s2 + $0x10] sm:$0xff] %vm1920, %v1743
  %1924 = vst.msk [vmem:[%s2 + $0x18] sm:$0xff] %vm1920, %v1749
  %1925 = vst.msk [vmem:[%s2 + $0x20] sm:$0xff] %vm1920, %v1755
  %1926 = vst.msk [vmem:[%s2 + $0x28] sm:$0xff] %vm1920, %v1761
  %1927 = vst.msk [vmem:[%s2 + $0x30] sm:$0xff] %vm1920, %v1767
  %1928 = vst.msk [vmem:[%s2 + $0x38] sm:$0xff] %vm1920, %v1773
  %1929 = vst.msk [vmem:[%s2 + $0x40] sm:$0xff] %vm1920, %v1779
  %1930 = vst.msk [vmem:[%s2 + $0x48] sm:$0xff] %vm1920, %v1785
  %1931 = vst.msk [vmem:[%s2 + $0x50] sm:$0xff] %vm1920, %v1791
  %1932 = vst.msk [vmem:[%s2 + $0x58] sm:$0xff] %vm1920, %v1797
  %1933 = vst.msk [vmem:[%s2 + $0x60] sm:$0xff] %vm1920, %v1803
  %1934 = vst.msk [vmem:[%s2 + $0x68] sm:$0xff] %vm1920, %v1809
  %1935 = vst.msk [vmem:[%s2 + $0x70] sm:$0xff] %vm1920, %v1815
  %1936 = vst.msk [vmem:[%s2 + $0x78] sm:$0xff] %vm1920, %v1821
  %1937 = vst.msk [vmem:[%s2 + $0x80] sm:$0xff] %vm1920, %v1827
  %1938 = vst.msk [vmem:[%s2 + $0x88] sm:$0xff] %vm1920, %v1833
  %1939 = vst.msk [vmem:[%s2 + $0x90] sm:$0xff] %vm1920, %v1839
  %1940 = vst.msk [vmem:[%s2 + $0x98] sm:$0xff] %vm1920, %v1845
  %1941 = vst.msk [vmem:[%s2 + $0xa0] sm:$0xff] %vm1920, %v1851
  %1942 = vst.msk [vmem:[%s2 + $0xa8] sm:$0xff] %vm1920, %v1857
  %1943 = vst.msk [vmem:[%s2 + $0xb0] sm:$0xff] %vm1920, %v1863
  %1944 = vst.msk [vmem:[%s2 + $0xb8] sm:$0xff] %vm1920, %v1869
  %1945 = vst.msk [vmem:[%s2 + $0xc0] sm:$0xff] %vm1920, %v1875
  %1946 = vst.msk [vmem:[%s2 + $0xc8] sm:$0xff] %vm1920, %v1881
  %1947 = vst.msk [vmem:[%s2 + $0xd0] sm:$0xff] %vm1920, %v1887
  %1948 = vst.msk [vmem:[%s2 + $0xd8] sm:$0xff] %vm1920, %v1893
  %1949 = vst.msk [vmem:[%s2 + $0xe0] sm:$0xff] %vm1920, %v1899
  %1950 = vst.msk [vmem:[%s2 + $0xe8] sm:$0xff] %vm1920, %v1905
  %1951 = vst.msk [vmem:[%s2 + $0xf0] sm:$0xff] %vm1920, %v1911
  %1952 = vst.msk [vmem:[%s2 + $0xf8] sm:$0xff] %vm1920, %v1917
  // Predicated region
  $region10: #{_resize_all_patches.1} parent=0 // pred_check
    _
  $region11: #{_resize_all_patches.1} parent=0 // pred_check_branch
    %1954 = sbr.rel (0) target = $region13
  $region12: #{_resize_all_patches.1} parent=0 // pred_region
    _
  $region13: #{_resize_all_patches.1} parent=0 // pred_fallthru
    _
  // Predicated region
  $region14: #{_resize_all_patches.1} parent=0 // pred_check
    _
  $region15: #{_resize_all_patches.1} parent=0 // pred_check_branch
    %1956 = sbr.rel (0) target = $region17
  $region16: #{_resize_all_patches.1} parent=0 // pred_region
    _
  $region17: #{_resize_all_patches.1} parent=0 // pred_fallthru
    _

</llo_original>
